<compile_context>
chip_gen: v7x
topology: tpu7x:2x2x1
jax: 0.10.0
libtpu: 0.0.40
codegen_flags: <defaults>
</compile_context>

<pallas_src>
import numpy as np

import jax
import jax.numpy as jnp
from jax.experimental import pallas as pl
from jax.experimental.pallas import tpu as pltpu


# ------------------------------ fused kernel --------------------------------

def _cnn_kernel(x_ref, w1_ref, b1_ref, w2_ref, b2_ref, w3_ref, b3_ref,
                fw_ref, fb_ref, o_ref, a2_ref, a3_ref):
    TB = o_ref.shape[0]          # batch tile (multiple of 8)
    f32 = jnp.float32
    bf16 = jnp.bfloat16

    def hpool_bias_relu(acc, b_ref):
        # acc: (hu*TB, 256) f32; bias is zero on the pad lanes.
        a = jnp.maximum(acc + b_ref[...], 0.0)
        # Horizontal 2x max: even-j columns live in lanes [0,128), odd-j in
        # [128,256) -> lane-tile aligned half-vs-half max.
        return jnp.maximum(a[:, :128], a[:, 128:])

    def vpool_store(hmax, ho, dst_ref):
        # Vertical 2x max, written directly into the next layer's padded slab
        # (interior starts at row TB); rows of hmax are conv_row*TB + b.
        for io in range(ho):
            m = jnp.maximum(hmax[(2 * io) * TB:(2 * io + 1) * TB, :],
                            hmax[(2 * io + 1) * TB:(2 * io + 2) * TB, :])
            dst_ref[pl.ds((io + 1) * TB, TB), :] = m.astype(dst_ref.dtype)

    def conv3(src_ref, w_ref, hu):
        # 3 MXU matmuls (one per ky) against padding-folded banded weights.
        acc = jnp.dot(src_ref[pl.ds(0, hu * TB), :].astype(bf16), w_ref[0],
                      preferred_element_type=f32)
        for ky in (1, 2):
            acc = acc + jnp.dot(
                src_ref[pl.ds(ky * TB, hu * TB), :].astype(bf16), w_ref[ky],
                preferred_element_type=f32)
        return acc

    # Zero the row-padding borders of the activation slabs (interiors are
    # fully overwritten below).
    zrow = jnp.zeros((TB, 128), a2_ref.dtype)
    a2_ref[pl.ds(0, TB), :] = zrow
    a2_ref[pl.ds(15 * TB, TB), :] = zrow
    a3_ref[pl.ds(0, TB), :] = zrow

    # Layer 1: conv(1->8)+BN+ReLU+pool.  ky taps merged host-side -> 1 matmul.
    acc = jnp.dot(x_ref[0], w1_ref[...], preferred_element_type=f32)  # (28TB,256)
    vpool_store(hpool_bias_relu(acc, b1_ref), 14, a2_ref)             # -> 14x14x8

    # Layer 2: conv(8->16)+BN+ReLU+pool.
    acc = conv3(a2_ref, w2_ref, 14)                                    # (14TB,256)
    vpool_store(hpool_bias_relu(acc, b2_ref), 7, a3_ref)               # -> 7x7x16

    # Layer 3: conv(16->32)+BN+ReLU+pool (floor: 7->3), flatten for fc.
    acc = conv3(a3_ref, w3_ref, 6)                                     # (6TB,256)
    hm = hpool_bias_relu(acc, b3_ref)                                  # (6TB,128)
    xf = jnp.concatenate(
        [jnp.maximum(hm[(2 * i) * TB:(2 * i + 1) * TB, :],
                     hm[(2 * i + 1) * TB:(2 * i + 2) * TB, :])
         for i in range(3)], axis=1).astype(bf16)                      # (TB,384)

    o_ref[...] = (jnp.dot(xf, fw_ref[...], preferred_element_type=f32)
                  + fb_ref[...]).astype(o_ref.dtype)


# ------------------------- host-side weight prep ----------------------------

def _band1(w_f):
    """Layer-1 band (ky merged): (96, 256).

    Input lane = ky*32 + padded_col (30 cols, 2 pad lanes).  Output lane for
    conv column j, channel co is (j%2)*128 + (j//2)*8 + co (128-lane aligned
    pool halves)."""
    band = np.zeros((96, 256), np.float32)
    for ky in range(3):
        for j in range(28):
            dst = (j % 2) * 128 + (j // 2) * 8
            for kx in range(3):
                band[ky * 32 + j + kx, dst:dst + 8] += w_f[ky, kx, 0]
    return band


def _band_inner(w_f, W, cout):
    """Layers 2/3 band: (3, 128, 256), pad=1 column padding folded in.

    Input lane = w*cin + c against the UNPADDED width W (pad lanes >= W*cin
    are zero rows).  Output lane = (j%2)*128 + (j//2)*cout + co."""
    cin = w_f.shape[2]
    wu = 2 * (W // 2)
    band = np.zeros((3, 128, 256), np.float32)
    for ky in range(3):
        for j in range(wu):
            dst = (j % 2) * 128 + (j // 2) * cout
            for kx in range(3):
                wi = j + kx - 1
                if 0 <= wi < W:
                    band[ky, wi * cin:(wi + 1) * cin, dst:dst + cout] = w_f[ky, kx]
    return band


def _band_bias(bf, W, cout):
    wu = 2 * (W // 2)
    bias = np.zeros((1, 256), np.float32)
    for j in range(wu):
        dst = (j % 2) * 128 + (j // 2) * cout
        bias[0, dst:dst + cout] = bf
    return bias


def prepare_kernel_params(raw, eps=1e-5):
    """Fold BN into conv weights and build kernel-ready (banded, bf16) operands."""
    def fold(w, b, bn):
        gamma, beta, rmean, rvar = bn
        scale = gamma / jnp.sqrt(rvar + eps)
        return (np.asarray(w * scale, np.float32),
                np.asarray(b * scale + beta - rmean * scale, np.float32))

    kp = {}
    wf1, bf1 = fold(raw["w1"], raw["b1"], raw["bn1"])
    kp["wband1"] = jnp.asarray(_band1(wf1), jnp.bfloat16)
    kp["bias1"] = jnp.asarray(_band_bias(bf1, 28, 8))

    wf2, bf2 = fold(raw["w2"], raw["b2"], raw["bn2"])
    kp["wband2"] = jnp.asarray(_band_inner(wf2, 14, 16), jnp.bfloat16)
    kp["bias2"] = jnp.asarray(_band_bias(bf2, 14, 16))

    wf3, bf3 = fold(raw["w3"], raw["b3"], raw["bn3"])
    kp["wband3"] = jnp.asarray(_band_inner(wf3, 7, 32), jnp.bfloat16)
    kp["bias3"] = jnp.asarray(_band_bias(bf3, 7, 32))

    # fc: kernel flatten order is lane = io*128 + jo*32 + co (zero rows on the
    # 32 pad lanes of each io block); PyTorch view(B,-1) order is co*9+io*3+jo.
    fcw = np.asarray(raw["fc_w"], np.float32)
    nc = fcw.shape[1]
    fw = np.zeros((384, nc), np.float32)
    for io in range(3):
        for jo in range(3):
            for co in range(32):
                fw[io * 128 + jo * 32 + co] = fcw[co * 9 + io * 3 + jo]
    kp["fc_w"] = jnp.asarray(fw, jnp.bfloat16)
    kp["fc_b"] = jnp.asarray(np.asarray(raw["fc_b"], np.float32)[None, :])
    return kp


def make_params(key, num_classes=10):
    """Random parameters in PyTorch-equivalent (inference-mode) form."""
    ks = iter(jax.random.split(key, 24))

    def nrm(shape, s=0.1):
        return s * jax.random.normal(next(ks), shape, jnp.float32)

    raw = {}
    for idx, (cin, cout) in enumerate([(1, 8), (8, 16), (16, 32)], start=1):
        raw[f"w{idx}"] = nrm((3, 3, cin, cout))
        raw[f"b{idx}"] = nrm((cout,))
        gamma = 1.0 + nrm((cout,))
        beta = nrm((cout,))
        rmean = nrm((cout,))
        rvar = 1.0 + jax.random.uniform(next(ks), (cout,), jnp.float32)
        raw[f"bn{idx}"] = (gamma, beta, rmean, rvar)
    raw["fc_w"] = nrm((32 * 3 * 3, num_classes))
    raw["fc_b"] = nrm((num_classes,))
    return raw


# ------------------------------ forward pass --------------------------------

def _round_up(x, m):
    return (x + m - 1) // m * m


def cnn_forward(x_nchw, kp, block_b=256):
    """x_nchw: (B, 1, 28, 28) float32 -> (B, num_classes)."""
    B, _, H, W = x_nchw.shape
    assert (H, W) == (28, 28), "fc layer expects 28x28 inputs (32*3*3 features)"
    TB = min(block_b, _round_up(B, 8))        # batch tile (multiple of 8)
    Bp = _round_up(B, TB)
    nt = Bp // TB
    nc = kp["fc_w"].shape[1]

    # Layer-1 lhs built in XLA: (nt, 28*TB, 96) bf16, row = h*TB + b_local,
    # lane block ky*32 holds padded row h+ky (30 cols zero-padded to 32).
    x = x_nchw.reshape(B, 28, 28).astype(jnp.float32)
    xp = jnp.pad(x, ((0, Bp - B), (1, 1), (1, 1)))                    # (Bp,30,30)
    sl = jnp.stack([xp[:, ky:ky + 28, :] for ky in range(3)], axis=2)  # (Bp,28,3,30)
    sl = jnp.pad(sl, ((0, 0), (0, 0), (0, 0), (0, 2)))                 # (Bp,28,3,32)
    x_in = sl.reshape(Bp, 28, 96).astype(jnp.bfloat16)
    x_in = x_in.reshape(nt, TB, 28, 96).transpose(0, 2, 1, 3).reshape(nt, 28 * TB, 96)

    flops = nt * 2 * TB * (28 * 96 * 256 + 3 * 14 * 128 * 256
                           + 3 * 6 * 128 * 256 + 384 * nc)
    bytes_accessed = int(x_in.size) * 2 + Bp * nc * 4 + \
        sum(int(v.size) * v.dtype.itemsize for v in kp.values())

    out = pl.pallas_call(
        _cnn_kernel,
        out_shape=jax.ShapeDtypeStruct((Bp, nc), jnp.float32),
        grid=(nt,),
        in_specs=[
            pl.BlockSpec((1, 28 * TB, 96), lambda t: (t, 0, 0)),      # input tile
            pl.BlockSpec(kp["wband1"].shape, lambda t: (0, 0)),
            pl.BlockSpec(kp["bias1"].shape, lambda t: (0, 0)),
            pl.BlockSpec(kp["wband2"].shape, lambda t: (0, 0, 0)),
            pl.BlockSpec(kp["bias2"].shape, lambda t: (0, 0)),
            pl.BlockSpec(kp["wband3"].shape, lambda t: (0, 0, 0)),
            pl.BlockSpec(kp["bias3"].shape, lambda t: (0, 0)),
            pl.BlockSpec(kp["fc_w"].shape, lambda t: (0, 0)),
            pl.BlockSpec(kp["fc_b"].shape, lambda t: (0, 0)),
        ],
        out_specs=pl.BlockSpec((TB, nc), lambda t: (t, 0)),
        scratch_shapes=[pltpu.VMEM((16 * TB, 128), jnp.float32),   # layer-2 slab
                        pltpu.VMEM((8 * TB, 128), jnp.float32)],   # layer-3 slab
        compiler_params=pltpu.CompilerParams(
            dimension_semantics=("parallel",),
            vmem_limit_bytes=48 * 1024 * 1024),
        cost_estimate=pl.CostEstimate(flops=flops, transcendentals=0,
                                      bytes_accessed=int(bytes_accessed)),
    )(x_in, kp["wband1"], kp["bias1"], kp["wband2"], kp["bias2"],
      kp["wband3"], kp["bias3"], kp["fc_w"], kp["fc_b"])
    return out[:B]


# ------------------------- pure-JAX reference (check) ------------------------

def _reference_forward(x_nchw, raw, eps=1e-5):
    def block(x, w, b, bn):
        gamma, beta, rmean, rvar = bn
        wt = jnp.transpose(w, (3, 2, 0, 1))                       # OIHW
        y = jax.lax.conv_general_dilated(
            x, wt, (1, 1), ((1, 1), (1, 1)),
            dimension_numbers=("NCHW", "OIHW", "NCHW"),
            precision=jax.lax.Precision.HIGHEST)
        y = y + b[None, :, None, None]
        scale = gamma / jnp.sqrt(rvar + eps)
        y = y * scale[None, :, None, None] + (beta - rmean * scale)[None, :, None, None]
        y = jnp.maximum(y, 0.0)
        B, C, H, W = y.shape
        ho, wo = H // 2, W // 2
        y = y[:, :, :2 * ho, :2 * wo].reshape(B, C, ho, 2, wo, 2)
        return jnp.max(y, axis=(3, 5))

    x = block(x_nchw, raw["w1"], raw["b1"], raw["bn1"])
    x = block(x, raw["w2"], raw["b2"], raw["bn2"])
    x = block(x, raw["w3"], raw["b3"], raw["bn3"])
    xf = x.reshape(x.shape[0], -1)
    return jnp.dot(xf, raw["fc_w"],
                   precision=jax.lax.Precision.HIGHEST) + raw["fc_b"]


if __name__ == "__main__":
    key = jax.random.PRNGKey(0)
    k_x, k_p = jax.random.split(key)
    # input must be 28x28 so the three 2x2 pools give 3x3 (fc expects 32*3*3)
    x = jax.random.normal(k_x, (2, 1, 28, 28), jnp.float32)
    raw = make_params(k_p, num_classes=10)
    kp = prepare_kernel_params(raw)

    out = jax.jit(cnn_forward)(x, kp)
    out = jax.block_until_ready(out)
    assert out.shape == (2, 10)

    ref = _reference_forward(x, raw)
    # bf16 matmul operands -> slightly looser tolerance than pure-f32 version.
    assert jnp.allclose(out, ref, atol=5e-2, rtol=5e-2), \
        float(jnp.max(jnp.abs(out - ref)))
    print("KERNEL_OK")
</pallas_src>

<mosaic_0001>
module attributes {stable_mosaic.version = 11 : i64} {
  func.func @_cnn_kernel(%arg0: i32, %arg1: memref<1x224x96xbf16, #tpu.memory_space<vmem>>, %arg2: memref<96x256xbf16, #tpu.memory_space<vmem>>, %arg3: memref<1x256xf32, #tpu.memory_space<vmem>>, %arg4: memref<3x128x256xbf16, #tpu.memory_space<vmem>>, %arg5: memref<1x256xf32, #tpu.memory_space<vmem>>, %arg6: memref<3x128x256xbf16, #tpu.memory_space<vmem>>, %arg7: memref<1x256xf32, #tpu.memory_space<vmem>>, %arg8: memref<384x10xbf16, #tpu.memory_space<vmem>>, %arg9: memref<1x10xf32, #tpu.memory_space<vmem>>, %arg10: memref<8x10xf32, #tpu.memory_space<vmem>>, %arg11: memref<128x128xf32, #tpu.memory_space<vmem>>, %arg12: memref<64x128xf32, #tpu.memory_space<vmem>>) attributes {dimension_semantics = [#tpu.dimension_semantics<parallel>], iteration_bounds = array<i64: 1>, scalar_prefetch = 0 : i64, scratch_operands = 2 : i64, tpu.core_type = #tpu.core_type<tc>, window_params = [{transform_indices = @transform_0, window_bounds = array<i64: 1, 224, 96>}, {pipeline_mode = #tpu.pipeline_mode<synchronous>, transform_indices = @transform_1, window_bounds = array<i64: 96, 256>}, {pipeline_mode = #tpu.pipeline_mode<synchronous>, transform_indices = @transform_2, window_bounds = array<i64: 1, 256>}, {pipeline_mode = #tpu.pipeline_mode<synchronous>, transform_indices = @transform_3, window_bounds = array<i64: 3, 128, 256>}, {pipeline_mode = #tpu.pipeline_mode<synchronous>, transform_indices = @transform_4, window_bounds = array<i64: 1, 256>}, {pipeline_mode = #tpu.pipeline_mode<synchronous>, transform_indices = @transform_5, window_bounds = array<i64: 3, 128, 256>}, {pipeline_mode = #tpu.pipeline_mode<synchronous>, transform_indices = @transform_6, window_bounds = array<i64: 1, 256>}, {pipeline_mode = #tpu.pipeline_mode<synchronous>, transform_indices = @transform_7, window_bounds = array<i64: 384, 10>}, {pipeline_mode = #tpu.pipeline_mode<synchronous>, transform_indices = @transform_8, window_bounds = array<i64: 1, 10>}, {transform_indices = @transform_9, window_bounds = array<i64: 8, 10>}]} {
    %cst = arith.constant 0.000000e+00 : f32
    %0 = vector.broadcast %cst : f32 to vector<8x128xf32>
    %c0 = arith.constant 0 : index
    %c0_0 = arith.constant 0 : index
    %1 = vector.load %arg11[%c0, %c0_0] : memref<128x128xf32, #tpu.memory_space<vmem>>, vector<8x128xf32>
    tpu.vector_store %arg11[%c0, %c0_0], %0 {strides = array<i32>} : memref<128x128xf32, #tpu.memory_space<vmem>>, vector<8x128xf32>,
    %c120 = arith.constant 120 : index
    %c0_1 = arith.constant 0 : index
    %2 = vector.load %arg11[%c120, %c0_1] : memref<128x128xf32, #tpu.memory_space<vmem>>, vector<8x128xf32>
    tpu.vector_store %arg11[%c120, %c0_1], %0 {strides = array<i32>} : memref<128x128xf32, #tpu.memory_space<vmem>>, vector<8x128xf32>,
    %c0_2 = arith.constant 0 : index
    %c0_3 = arith.constant 0 : index
    %3 = vector.load %arg12[%c0_2, %c0_3] : memref<64x128xf32, #tpu.memory_space<vmem>>, vector<8x128xf32>
    tpu.vector_store %arg12[%c0_2, %c0_3], %0 {strides = array<i32>} : memref<64x128xf32, #tpu.memory_space<vmem>>, vector<8x128xf32>,
    %c0_4 = arith.constant 0 : index
    %c0_5 = arith.constant 0 : index
    %c0_6 = arith.constant 0 : index
    %4 = vector.load %arg1[%c0_4, %c0_5, %c0_6] : memref<1x224x96xbf16, #tpu.memory_space<vmem>>, vector<1x224x96xbf16>
    %5 = vector.shape_cast %4 : vector<1x224x96xbf16> to vector<224x96xbf16>
    %c0_7 = arith.constant 0 : index
    %c0_8 = arith.constant 0 : index
    %6 = vector.load %arg2[%c0_7, %c0_8] : memref<96x256xbf16, #tpu.memory_space<vmem>>, vector<96x256xbf16>
    %cst_9 = arith.constant dense<0.000000e+00> : vector<224x256xf32>
    %7 = tpu.matmul %5, %6, %cst_9 {dimension_numbers = #tpu.dot_dimension_numbers<[1], [0], [0], [1], [0, 0, 1, 1], [], []>} : vector<224x96xbf16>, vector<96x256xbf16>, vector<224x256xf32> -> vector<224x256xf32>
    %c0_10 = arith.constant 0 : index
    %c0_11 = arith.constant 0 : index
    %8 = vector.load %arg3[%c0_10, %c0_11] : memref<1x256xf32, #tpu.memory_space<vmem>>, vector<1x256xf32>
    %9 = vector.broadcast %8 : vector<1x256xf32> to vector<224x256xf32>
    %10 = arith.addf %7, %9 : vector<224x256xf32>
    %cst_12 = arith.constant 0.000000e+00 : f32
    %11 = vector.broadcast %cst_12 : f32 to vector<224x256xf32>
    %12 = arith.maximumf %10, %11 : vector<224x256xf32>
    %13 = vector.extract_strided_slice %12 {offsets = [0, 0], sizes = [224, 128], strides = [1, 1]} : vector<224x256xf32> to vector<224x128xf32>
    %14 = vector.extract_strided_slice %12 {offsets = [0, 128], sizes = [224, 128], strides = [1, 1]} : vector<224x256xf32> to vector<224x128xf32>
    %15 = arith.maximumf %13, %14 : vector<224x128xf32>
    %16 = vector.extract_strided_slice %15 {offsets = [0, 0], sizes = [8, 128], strides = [1, 1]} : vector<224x128xf32> to vector<8x128xf32>
    %17 = vector.extract_strided_slice %15 {offsets = [8, 0], sizes = [8, 128], strides = [1, 1]} : vector<224x128xf32> to vector<8x128xf32>
    %18 = arith.maximumf %16, %17 : vector<8x128xf32>
    %c8 = arith.constant 8 : index
    %c0_13 = arith.constant 0 : index
    %19 = vector.load %arg11[%c8, %c0_13] : memref<128x128xf32, #tpu.memory_space<vmem>>, vector<8x128xf32>
    tpu.vector_store %arg11[%c8, %c0_13], %18 {strides = array<i32>} : memref<128x128xf32, #tpu.memory_space<vmem>>, vector<8x128xf32>,
    %20 = vector.extract_strided_slice %15 {offsets = [16, 0], sizes = [8, 128], strides = [1, 1]} : vector<224x128xf32> to vector<8x128xf32>
    %21 = vector.extract_strided_slice %15 {offsets = [24, 0], sizes = [8, 128], strides = [1, 1]} : vector<224x128xf32> to vector<8x128xf32>
    %22 = arith.maximumf %20, %21 : vector<8x128xf32>
    %c16 = arith.constant 16 : index
    %c0_14 = arith.constant 0 : index
    %23 = vector.load %arg11[%c16, %c0_14] : memref<128x128xf32, #tpu.memory_space<vmem>>, vector<8x128xf32>
    tpu.vector_store %arg11[%c16, %c0_14], %22 {strides = array<i32>} : memref<128x128xf32, #tpu.memory_space<vmem>>, vector<8x128xf32>,
    %24 = vector.extract_strided_slice %15 {offsets = [32, 0], sizes = [8, 128], strides = [1, 1]} : vector<224x128xf32> to vector<8x128xf32>
    %25 = vector.extract_strided_slice %15 {offsets = [40, 0], sizes = [8, 128], strides = [1, 1]} : vector<224x128xf32> to vector<8x128xf32>
    %26 = arith.maximumf %24, %25 : vector<8x128xf32>
    %c24 = arith.constant 24 : index
    %c0_15 = arith.constant 0 : index
    %27 = vector.load %arg11[%c24, %c0_15] : memref<128x128xf32, #tpu.memory_space<vmem>>, vector<8x128xf32>
    tpu.vector_store %arg11[%c24, %c0_15], %26 {strides = array<i32>} : memref<128x128xf32, #tpu.memory_space<vmem>>, vector<8x128xf32>,
    %28 = vector.extract_strided_slice %15 {offsets = [48, 0], sizes = [8, 128], strides = [1, 1]} : vector<224x128xf32> to vector<8x128xf32>
    %29 = vector.extract_strided_slice %15 {offsets = [56, 0], sizes = [8, 128], strides = [1, 1]} : vector<224x128xf32> to vector<8x128xf32>
    %30 = arith.maximumf %28, %29 : vector<8x128xf32>
    %c32 = arith.constant 32 : index
    %c0_16 = arith.constant 0 : index
    %31 = vector.load %arg11[%c32, %c0_16] : memref<128x128xf32, #tpu.memory_space<vmem>>, vector<8x128xf32>
    tpu.vector_store %arg11[%c32, %c0_16], %30 {strides = array<i32>} : memref<128x128xf32, #tpu.memory_space<vmem>>, vector<8x128xf32>,
    %32 = vector.extract_strided_slice %15 {offsets = [64, 0], sizes = [8, 128], strides = [1, 1]} : vector<224x128xf32> to vector<8x128xf32>
    %33 = vector.extract_strided_slice %15 {offsets = [72, 0], sizes = [8, 128], strides = [1, 1]} : vector<224x128xf32> to vector<8x128xf32>
    %34 = arith.maximumf %32, %33 : vector<8x128xf32>
    %c40 = arith.constant 40 : index
    %c0_17 = arith.constant 0 : index
    %35 = vector.load %arg11[%c40, %c0_17] : memref<128x128xf32, #tpu.memory_space<vmem>>, vector<8x128xf32>
    tpu.vector_store %arg11[%c40, %c0_17], %34 {strides = array<i32>} : memref<128x128xf32, #tpu.memory_space<vmem>>, vector<8x128xf32>,
    %36 = vector.extract_strided_slice %15 {offsets = [80, 0], sizes = [8, 128], strides = [1, 1]} : vector<224x128xf32> to vector<8x128xf32>
    %37 = vector.extract_strided_slice %15 {offsets = [88, 0], sizes = [8, 128], strides = [1, 1]} : vector<224x128xf32> to vector<8x128xf32>
    %38 = arith.maximumf %36, %37 : vector<8x128xf32>
    %c48 = arith.constant 48 : index
    %c0_18 = arith.constant 0 : index
    %39 = vector.load %arg11[%c48, %c0_18] : memref<128x128xf32, #tpu.memory_space<vmem>>, vector<8x128xf32>
    tpu.vector_store %arg11[%c48, %c0_18], %38 {strides = array<i32>} : memref<128x128xf32, #tpu.memory_space<vmem>>, vector<8x128xf32>,
    %40 = vector.extract_strided_slice %15 {offsets = [96, 0], sizes = [8, 128], strides = [1, 1]} : vector<224x128xf32> to vector<8x128xf32>
    %41 = vector.extract_strided_slice %15 {offsets = [104, 0], sizes = [8, 128], strides = [1, 1]} : vector<224x128xf32> to vector<8x128xf32>
    %42 = arith.maximumf %40, %41 : vector<8x128xf32>
    %c56 = arith.constant 56 : index
    %c0_19 = arith.constant 0 : index
    %43 = vector.load %arg11[%c56, %c0_19] : memref<128x128xf32, #tpu.memory_space<vmem>>, vector<8x128xf32>
    tpu.vector_store %arg11[%c56, %c0_19], %42 {strides = array<i32>} : memref<128x128xf32, #tpu.memory_space<vmem>>, vector<8x128xf32>,
    %44 = vector.extract_strided_slice %15 {offsets = [112, 0], sizes = [8, 128], strides = [1, 1]} : vector<224x128xf32> to vector<8x128xf32>
    %45 = vector.extract_strided_slice %15 {offsets = [120, 0], sizes = [8, 128], strides = [1, 1]} : vector<224x128xf32> to vector<8x128xf32>
    %46 = arith.maximumf %44, %45 : vector<8x128xf32>
    %c64 = arith.constant 64 : index
    %c0_20 = arith.constant 0 : index
    %47 = vector.load %arg11[%c64, %c0_20] : memref<128x128xf32, #tpu.memory_space<vmem>>, vector<8x128xf32>
    tpu.vector_store %arg11[%c64, %c0_20], %46 {strides = array<i32>} : memref<128x128xf32, #tpu.memory_space<vmem>>, vector<8x128xf32>,
    %48 = vector.extract_strided_slice %15 {offsets = [128, 0], sizes = [8, 128], strides = [1, 1]} : vector<224x128xf32> to vector<8x128xf32>
    %49 = vector.extract_strided_slice %15 {offsets = [136, 0], sizes = [8, 128], strides = [1, 1]} : vector<224x128xf32> to vector<8x128xf32>
    %50 = arith.maximumf %48, %49 : vector<8x128xf32>
    %c72 = arith.constant 72 : index
    %c0_21 = arith.constant 0 : index
    %51 = vector.load %arg11[%c72, %c0_21] : memref<128x128xf32, #tpu.memory_space<vmem>>, vector<8x128xf32>
    tpu.vector_store %arg11[%c72, %c0_21], %50 {strides = array<i32>} : memref<128x128xf32, #tpu.memory_space<vmem>>, vector<8x128xf32>,
    %52 = vector.extract_strided_slice %15 {offsets = [144, 0], sizes = [8, 128], strides = [1, 1]} : vector<224x128xf32> to vector<8x128xf32>
    %53 = vector.extract_strided_slice %15 {offsets = [152, 0], sizes = [8, 128], strides = [1, 1]} : vector<224x128xf32> to vector<8x128xf32>
    %54 = arith.maximumf %52, %53 : vector<8x128xf32>
    %c80 = arith.constant 80 : index
    %c0_22 = arith.constant 0 : index
    %55 = vector.load %arg11[%c80, %c0_22] : memref<128x128xf32, #tpu.memory_space<vmem>>, vector<8x128xf32>
    tpu.vector_store %arg11[%c80, %c0_22], %54 {strides = array<i32>} : memref<128x128xf32, #tpu.memory_space<vmem>>, vector<8x128xf32>,
    %56 = vector.extract_strided_slice %15 {offsets = [160, 0], sizes = [8, 128], strides = [1, 1]} : vector<224x128xf32> to vector<8x128xf32>
    %57 = vector.extract_strided_slice %15 {offsets = [168, 0], sizes = [8, 128], strides = [1, 1]} : vector<224x128xf32> to vector<8x128xf32>
    %58 = arith.maximumf %56, %57 : vector<8x128xf32>
    %c88 = arith.constant 88 : index
    %c0_23 = arith.constant 0 : index
    %59 = vector.load %arg11[%c88, %c0_23] : memref<128x128xf32, #tpu.memory_space<vmem>>, vector<8x128xf32>
    tpu.vector_store %arg11[%c88, %c0_23], %58 {strides = array<i32>} : memref<128x128xf32, #tpu.memory_space<vmem>>, vector<8x128xf32>,
    %60 = vector.extract_strided_slice %15 {offsets = [176, 0], sizes = [8, 128], strides = [1, 1]} : vector<224x128xf32> to vector<8x128xf32>
    %61 = vector.extract_strided_slice %15 {offsets = [184, 0], sizes = [8, 128], strides = [1, 1]} : vector<224x128xf32> to vector<8x128xf32>
    %62 = arith.maximumf %60, %61 : vector<8x128xf32>
    %c96 = arith.constant 96 : index
    %c0_24 = arith.constant 0 : index
    %63 = vector.load %arg11[%c96, %c0_24] : memref<128x128xf32, #tpu.memory_space<vmem>>, vector<8x128xf32>
    tpu.vector_store %arg11[%c96, %c0_24], %62 {strides = array<i32>} : memref<128x128xf32, #tpu.memory_space<vmem>>, vector<8x128xf32>,
    %64 = vector.extract_strided_slice %15 {offsets = [192, 0], sizes = [8, 128], strides = [1, 1]} : vector<224x128xf32> to vector<8x128xf32>
    %65 = vector.extract_strided_slice %15 {offsets = [200, 0], sizes = [8, 128], strides = [1, 1]} : vector<224x128xf32> to vector<8x128xf32>
    %66 = arith.maximumf %64, %65 : vector<8x128xf32>
    %c104 = arith.constant 104 : index
    %c0_25 = arith.constant 0 : index
    %67 = vector.load %arg11[%c104, %c0_25] : memref<128x128xf32, #tpu.memory_space<vmem>>, vector<8x128xf32>
    tpu.vector_store %arg11[%c104, %c0_25], %66 {strides = array<i32>} : memref<128x128xf32, #tpu.memory_space<vmem>>, vector<8x128xf32>,
    %68 = vector.extract_strided_slice %15 {offsets = [208, 0], sizes = [8, 128], strides = [1, 1]} : vector<224x128xf32> to vector<8x128xf32>
    %69 = vector.extract_strided_slice %15 {offsets = [216, 0], sizes = [8, 128], strides = [1, 1]} : vector<224x128xf32> to vector<8x128xf32>
    %70 = arith.maximumf %68, %69 : vector<8x128xf32>
    %c112 = arith.constant 112 : index
    %c0_26 = arith.constant 0 : index
    %71 = vector.load %arg11[%c112, %c0_26] : memref<128x128xf32, #tpu.memory_space<vmem>>, vector<8x128xf32>
    tpu.vector_store %arg11[%c112, %c0_26], %70 {strides = array<i32>} : memref<128x128xf32, #tpu.memory_space<vmem>>, vector<8x128xf32>,
    %c0_27 = arith.constant 0 : index
    %c0_28 = arith.constant 0 : index
    %72 = vector.load %arg11[%c0_27, %c0_28] : memref<128x128xf32, #tpu.memory_space<vmem>>, vector<112x128xf32>
    %73 = arith.truncf %72 : vector<112x128xf32> to vector<112x128xbf16>
    %c0_29 = arith.constant 0 : index
    %c0_30 = arith.constant 0 : index
    %c0_31 = arith.constant 0 : index
    %74 = vector.load %arg4[%c0_29, %c0_30, %c0_31] : memref<3x128x256xbf16, #tpu.memory_space<vmem>>, vector<1x128x256xbf16>
    %75 = vector.shape_cast %74 : vector<1x128x256xbf16> to vector<128x256xbf16>
    %cst_32 = arith.constant dense<0.000000e+00> : vector<112x256xf32>
    %76 = tpu.matmul %73, %75, %cst_32 {dimension_numbers = #tpu.dot_dimension_numbers<[1], [0], [0], [1], [0, 0, 1, 1], [], []>} : vector<112x128xbf16>, vector<128x256xbf16>, vector<112x256xf32> -> vector<112x256xf32>
    %c8_33 = arith.constant 8 : index
    %c0_34 = arith.constant 0 : index
    %77 = vector.load %arg11[%c8_33, %c0_34] : memref<128x128xf32, #tpu.memory_space<vmem>>, vector<112x128xf32>
    %78 = arith.truncf %77 : vector<112x128xf32> to vector<112x128xbf16>
    %c1 = arith.constant 1 : index
    %c0_35 = arith.constant 0 : index
    %c0_36 = arith.constant 0 : index
    %79 = vector.load %arg4[%c1, %c0_35, %c0_36] : memref<3x128x256xbf16, #tpu.memory_space<vmem>>, vector<1x128x256xbf16>
    %80 = vector.shape_cast %79 : vector<1x128x256xbf16> to vector<128x256xbf16>
    %cst_37 = arith.constant dense<0.000000e+00> : vector<112x256xf32>
    %81 = tpu.matmul %78, %80, %cst_37 {dimension_numbers = #tpu.dot_dimension_numbers<[1], [0], [0], [1], [0, 0, 1, 1], [], []>} : vector<112x128xbf16>, vector<128x256xbf16>, vector<112x256xf32> -> vector<112x256xf32>
    %82 = arith.addf %76, %81 : vector<112x256xf32>
    %c16_38 = arith.constant 16 : index
    %c0_39 = arith.constant 0 : index
    %83 = vector.load %arg11[%c16_38, %c0_39] : memref<128x128xf32, #tpu.memory_space<vmem>>, vector<112x128xf32>
    %84 = arith.truncf %83 : vector<112x128xf32> to vector<112x128xbf16>
    %c2 = arith.constant 2 : index
    %c0_40 = arith.constant 0 : index
    %c0_41 = arith.constant 0 : index
    %85 = vector.load %arg4[%c2, %c0_40, %c0_41] : memref<3x128x256xbf16, #tpu.memory_space<vmem>>, vector<1x128x256xbf16>
    %86 = vector.shape_cast %85 : vector<1x128x256xbf16> to vector<128x256xbf16>
    %cst_42 = arith.constant dense<0.000000e+00> : vector<112x256xf32>
    %87 = tpu.matmul %84, %86, %cst_42 {dimension_numbers = #tpu.dot_dimension_numbers<[1], [0], [0], [1], [0, 0, 1, 1], [], []>} : vector<112x128xbf16>, vector<128x256xbf16>, vector<112x256xf32> -> vector<112x256xf32>
    %88 = arith.addf %82, %87 : vector<112x256xf32>
    %c0_43 = arith.constant 0 : index
    %c0_44 = arith.constant 0 : index
    %89 = vector.load %arg5[%c0_43, %c0_44] : memref<1x256xf32, #tpu.memory_space<vmem>>, vector<1x256xf32>
    %90 = vector.broadcast %89 : vector<1x256xf32> to vector<112x256xf32>
    %91 = arith.addf %88, %90 : vector<112x256xf32>
    %cst_45 = arith.constant 0.000000e+00 : f32
    %92 = vector.broadcast %cst_45 : f32 to vector<112x256xf32>
    %93 = arith.maximumf %91, %92 : vector<112x256xf32>
    %94 = vector.extract_strided_slice %93 {offsets = [0, 0], sizes = [112, 128], strides = [1, 1]} : vector<112x256xf32> to vector<112x128xf32>
    %95 = vector.extract_strided_slice %93 {offsets = [0, 128], sizes = [112, 128], strides = [1, 1]} : vector<112x256xf32> to vector<112x128xf32>
    %96 = arith.maximumf %94, %95 : vector<112x128xf32>
    %97 = vector.extract_strided_slice %96 {offsets = [0, 0], sizes = [8, 128], strides = [1, 1]} : vector<112x128xf32> to vector<8x128xf32>
    %98 = vector.extract_strided_slice %96 {offsets = [8, 0], sizes = [8, 128], strides = [1, 1]} : vector<112x128xf32> to vector<8x128xf32>
    %99 = arith.maximumf %97, %98 : vector<8x128xf32>
    %c8_46 = arith.constant 8 : index
    %c0_47 = arith.constant 0 : index
    %100 = vector.load %arg12[%c8_46, %c0_47] : memref<64x128xf32, #tpu.memory_space<vmem>>, vector<8x128xf32>
    tpu.vector_store %arg12[%c8_46, %c0_47], %99 {strides = array<i32>} : memref<64x128xf32, #tpu.memory_space<vmem>>, vector<8x128xf32>,
    %101 = vector.extract_strided_slice %96 {offsets = [16, 0], sizes = [8, 128], strides = [1, 1]} : vector<112x128xf32> to vector<8x128xf32>
    %102 = vector.extract_strided_slice %96 {offsets = [24, 0], sizes = [8, 128], strides = [1, 1]} : vector<112x128xf32> to vector<8x128xf32>
    %103 = arith.maximumf %101, %102 : vector<8x128xf32>
    %c16_48 = arith.constant 16 : index
    %c0_49 = arith.constant 0 : index
    %104 = vector.load %arg12[%c16_48, %c0_49] : memref<64x128xf32, #tpu.memory_space<vmem>>, vector<8x128xf32>
    tpu.vector_store %arg12[%c16_48, %c0_49], %103 {strides = array<i32>} : memref<64x128xf32, #tpu.memory_space<vmem>>, vector<8x128xf32>,
    %105 = vector.extract_strided_slice %96 {offsets = [32, 0], sizes = [8, 128], strides = [1, 1]} : vector<112x128xf32> to vector<8x128xf32>
    %106 = vector.extract_strided_slice %96 {offsets = [40, 0], sizes = [8, 128], strides = [1, 1]} : vector<112x128xf32> to vector<8x128xf32>
    %107 = arith.maximumf %105, %106 : vector<8x128xf32>
    %c24_50 = arith.constant 24 : index
    %c0_51 = arith.constant 0 : index
    %108 = vector.load %arg12[%c24_50, %c0_51] : memref<64x128xf32, #tpu.memory_space<vmem>>, vector<8x128xf32>
    tpu.vector_store %arg12[%c24_50, %c0_51], %107 {strides = array<i32>} : memref<64x128xf32, #tpu.memory_space<vmem>>, vector<8x128xf32>,
    %109 = vector.extract_strided_slice %96 {offsets = [48, 0], sizes = [8, 128], strides = [1, 1]} : vector<112x128xf32> to vector<8x128xf32>
    %110 = vector.extract_strided_slice %96 {offsets = [56, 0], sizes = [8, 128], strides = [1, 1]} : vector<112x128xf32> to vector<8x128xf32>
    %111 = arith.maximumf %109, %110 : vector<8x128xf32>
    %c32_52 = arith.constant 32 : index
    %c0_53 = arith.constant 0 : index
    %112 = vector.load %arg12[%c32_52, %c0_53] : memref<64x128xf32, #tpu.memory_space<vmem>>, vector<8x128xf32>
    tpu.vector_store %arg12[%c32_52, %c0_53], %111 {strides = array<i32>} : memref<64x128xf32, #tpu.memory_space<vmem>>, vector<8x128xf32>,
    %113 = vector.extract_strided_slice %96 {offsets = [64, 0], sizes = [8, 128], strides = [1, 1]} : vector<112x128xf32> to vector<8x128xf32>
    %114 = vector.extract_strided_slice %96 {offsets = [72, 0], sizes = [8, 128], strides = [1, 1]} : vector<112x128xf32> to vector<8x128xf32>
    %115 = arith.maximumf %113, %114 : vector<8x128xf32>
    %c40_54 = arith.constant 40 : index
    %c0_55 = arith.constant 0 : index
    %116 = vector.load %arg12[%c40_54, %c0_55] : memref<64x128xf32, #tpu.memory_space<vmem>>, vector<8x128xf32>
    tpu.vector_store %arg12[%c40_54, %c0_55], %115 {strides = array<i32>} : memref<64x128xf32, #tpu.memory_space<vmem>>, vector<8x128xf32>,
    %117 = vector.extract_strided_slice %96 {offsets = [80, 0], sizes = [8, 128], strides = [1, 1]} : vector<112x128xf32> to vector<8x128xf32>
    %118 = vector.extract_strided_slice %96 {offsets = [88, 0], sizes = [8, 128], strides = [1, 1]} : vector<112x128xf32> to vector<8x128xf32>
    %119 = arith.maximumf %117, %118 : vector<8x128xf32>
    %c48_56 = arith.constant 48 : index
    %c0_57 = arith.constant 0 : index
    %120 = vector.load %arg12[%c48_56, %c0_57] : memref<64x128xf32, #tpu.memory_space<vmem>>, vector<8x128xf32>
    tpu.vector_store %arg12[%c48_56, %c0_57], %119 {strides = array<i32>} : memref<64x128xf32, #tpu.memory_space<vmem>>, vector<8x128xf32>,
    %121 = vector.extract_strided_slice %96 {offsets = [96, 0], sizes = [8, 128], strides = [1, 1]} : vector<112x128xf32> to vector<8x128xf32>
    %122 = vector.extract_strided_slice %96 {offsets = [104, 0], sizes = [8, 128], strides = [1, 1]} : vector<112x128xf32> to vector<8x128xf32>
    %123 = arith.maximumf %121, %122 : vector<8x128xf32>
    %c56_58 = arith.constant 56 : index
    %c0_59 = arith.constant 0 : index
    %124 = vector.load %arg12[%c56_58, %c0_59] : memref<64x128xf32, #tpu.memory_space<vmem>>, vector<8x128xf32>
    tpu.vector_store %arg12[%c56_58, %c0_59], %123 {strides = array<i32>} : memref<64x128xf32, #tpu.memory_space<vmem>>, vector<8x128xf32>,
    %c0_60 = arith.constant 0 : index
    %c0_61 = arith.constant 0 : index
    %125 = vector.load %arg12[%c0_60, %c0_61] : memref<64x128xf32, #tpu.memory_space<vmem>>, vector<48x128xf32>
    %126 = arith.truncf %125 : vector<48x128xf32> to vector<48x128xbf16>
    %c0_62 = arith.constant 0 : index
    %c0_63 = arith.constant 0 : index
    %c0_64 = arith.constant 0 : index
    %127 = vector.load %arg6[%c0_62, %c0_63, %c0_64] : memref<3x128x256xbf16, #tpu.memory_space<vmem>>, vector<1x128x256xbf16>
    %128 = vector.shape_cast %127 : vector<1x128x256xbf16> to vector<128x256xbf16>
    %cst_65 = arith.constant dense<0.000000e+00> : vector<48x256xf32>
    %129 = tpu.matmul %126, %128, %cst_65 {dimension_numbers = #tpu.dot_dimension_numbers<[1], [0], [0], [1], [0, 0, 1, 1], [], []>} : vector<48x128xbf16>, vector<128x256xbf16>, vector<48x256xf32> -> vector<48x256xf32>
    %c8_66 = arith.constant 8 : index
    %c0_67 = arith.constant 0 : index
    %130 = vector.load %arg12[%c8_66, %c0_67] : memref<64x128xf32, #tpu.memory_space<vmem>>, vector<48x128xf32>
    %131 = arith.truncf %130 : vector<48x128xf32> to vector<48x128xbf16>
    %c1_68 = arith.constant 1 : index
    %c0_69 = arith.constant 0 : index
    %c0_70 = arith.constant 0 : index
    %132 = vector.load %arg6[%c1_68, %c0_69, %c0_70] : memref<3x128x256xbf16, #tpu.memory_space<vmem>>, vector<1x128x256xbf16>
    %133 = vector.shape_cast %132 : vector<1x128x256xbf16> to vector<128x256xbf16>
    %cst_71 = arith.constant dense<0.000000e+00> : vector<48x256xf32>
    %134 = tpu.matmul %131, %133, %cst_71 {dimension_numbers = #tpu.dot_dimension_numbers<[1], [0], [0], [1], [0, 0, 1, 1], [], []>} : vector<48x128xbf16>, vector<128x256xbf16>, vector<48x256xf32> -> vector<48x256xf32>
    %135 = arith.addf %129, %134 : vector<48x256xf32>
    %c16_72 = arith.constant 16 : index
    %c0_73 = arith.constant 0 : index
    %136 = vector.load %arg12[%c16_72, %c0_73] : memref<64x128xf32, #tpu.memory_space<vmem>>, vector<48x128xf32>
    %137 = arith.truncf %136 : vector<48x128xf32> to vector<48x128xbf16>
    %c2_74 = arith.constant 2 : index
    %c0_75 = arith.constant 0 : index
    %c0_76 = arith.constant 0 : index
    %138 = vector.load %arg6[%c2_74, %c0_75, %c0_76] : memref<3x128x256xbf16, #tpu.memory_space<vmem>>, vector<1x128x256xbf16>
    %139 = vector.shape_cast %138 : vector<1x128x256xbf16> to vector<128x256xbf16>
    %cst_77 = arith.constant dense<0.000000e+00> : vector<48x256xf32>
    %140 = tpu.matmul %137, %139, %cst_77 {dimension_numbers = #tpu.dot_dimension_numbers<[1], [0], [0], [1], [0, 0, 1, 1], [], []>} : vector<48x128xbf16>, vector<128x256xbf16>, vector<48x256xf32> -> vector<48x256xf32>
    %141 = arith.addf %135, %140 : vector<48x256xf32>
    %c0_78 = arith.constant 0 : index
    %c0_79 = arith.constant 0 : index
    %142 = vector.load %arg7[%c0_78, %c0_79] : memref<1x256xf32, #tpu.memory_space<vmem>>, vector<1x256xf32>
    %143 = vector.broadcast %142 : vector<1x256xf32> to vector<48x256xf32>
    %144 = arith.addf %141, %143 : vector<48x256xf32>
    %cst_80 = arith.constant 0.000000e+00 : f32
    %145 = vector.broadcast %cst_80 : f32 to vector<48x256xf32>
    %146 = arith.maximumf %144, %145 : vector<48x256xf32>
    %147 = vector.extract_strided_slice %146 {offsets = [0, 0], sizes = [48, 128], strides = [1, 1]} : vector<48x256xf32> to vector<48x128xf32>
    %148 = vector.extract_strided_slice %146 {offsets = [0, 128], sizes = [48, 128], strides = [1, 1]} : vector<48x256xf32> to vector<48x128xf32>
    %149 = arith.maximumf %147, %148 : vector<48x128xf32>
    %150 = vector.extract_strided_slice %149 {offsets = [0, 0], sizes = [8, 128], strides = [1, 1]} : vector<48x128xf32> to vector<8x128xf32>
    %151 = vector.extract_strided_slice %149 {offsets = [8, 0], sizes = [8, 128], strides = [1, 1]} : vector<48x128xf32> to vector<8x128xf32>
    %152 = arith.maximumf %150, %151 : vector<8x128xf32>
    %153 = vector.extract_strided_slice %149 {offsets = [16, 0], sizes = [8, 128], strides = [1, 1]} : vector<48x128xf32> to vector<8x128xf32>
    %154 = vector.extract_strided_slice %149 {offsets = [24, 0], sizes = [8, 128], strides = [1, 1]} : vector<48x128xf32> to vector<8x128xf32>
    %155 = arith.maximumf %153, %154 : vector<8x128xf32>
    %156 = vector.extract_strided_slice %149 {offsets = [32, 0], sizes = [8, 128], strides = [1, 1]} : vector<48x128xf32> to vector<8x128xf32>
    %157 = vector.extract_strided_slice %149 {offsets = [40, 0], sizes = [8, 128], strides = [1, 1]} : vector<48x128xf32> to vector<8x128xf32>
    %158 = arith.maximumf %156, %157 : vector<8x128xf32>
    %159 = tpu.concatenate %152, %155, %158 in 1 : vector<8x128xf32>, vector<8x128xf32>, vector<8x128xf32> -> vector<8x384xf32>
    %160 = arith.truncf %159 : vector<8x384xf32> to vector<8x384xbf16>
    %c0_81 = arith.constant 0 : index
    %c0_82 = arith.constant 0 : index
    %161 = vector.load %arg8[%c0_81, %c0_82] : memref<384x10xbf16, #tpu.memory_space<vmem>>, vector<384x10xbf16>
    %cst_83 = arith.constant dense<0.000000e+00> : vector<8x10xf32>
    %162 = tpu.matmul %160, %161, %cst_83 {dimension_numbers = #tpu.dot_dimension_numbers<[1], [0], [0], [1], [0, 0, 1, 1], [], []>} : vector<8x384xbf16>, vector<384x10xbf16>, vector<8x10xf32> -> vector<8x10xf32>
    %c0_84 = arith.constant 0 : index
    %c0_85 = arith.constant 0 : index
    %163 = vector.load %arg9[%c0_84, %c0_85] : memref<1x10xf32, #tpu.memory_space<vmem>>, vector<1x10xf32>
    %164 = vector.broadcast %163 : vector<1x10xf32> to vector<8x10xf32>
    %165 = arith.addf %162, %164 : vector<8x10xf32>
    %c0_86 = arith.constant 0 : index
    %c0_87 = arith.constant 0 : index
    %166 = vector.load %arg10[%c0_86, %c0_87] : memref<8x10xf32, #tpu.memory_space<vmem>>, vector<8x10xf32>
    tpu.vector_store %arg10[%c0_86, %c0_87], %165 {strides = array<i32>} : memref<8x10xf32, #tpu.memory_space<vmem>>, vector<8x10xf32>,
    return
  }
  func.func @transform_0(%arg0: i32) -> (i32, i32, i32) {
    %c0_i32 = arith.constant 0 : i32
    %c0_i32_0 = arith.constant 0 : i32
    %c0_i32_1 = arith.constant 0 : i32
    return %arg0, %c0_i32, %c0_i32_0 : i32, i32, i32
  }
  func.func @transform_1(%arg0: i32) -> (i32, i32) {
    %c0_i32 = arith.constant 0 : i32
    %c0_i32_0 = arith.constant 0 : i32
    %c0_i32_1 = arith.constant 0 : i32
    return %c0_i32, %c0_i32_0 : i32, i32
  }
  func.func @transform_2(%arg0: i32) -> (i32, i32) {
    %c0_i32 = arith.constant 0 : i32
    %c0_i32_0 = arith.constant 0 : i32
    %c0_i32_1 = arith.constant 0 : i32
    return %c0_i32, %c0_i32_0 : i32, i32
  }
  func.func @transform_3(%arg0: i32) -> (i32, i32, i32) {
    %c0_i32 = arith.constant 0 : i32
    %c0_i32_0 = arith.constant 0 : i32
    %c0_i32_1 = arith.constant 0 : i32
    %c0_i32_2 = arith.constant 0 : i32
    return %c0_i32, %c0_i32_0, %c0_i32_1 : i32, i32, i32
  }
  func.func @transform_4(%arg0: i32) -> (i32, i32) {
    %c0_i32 = arith.constant 0 : i32
    %c0_i32_0 = arith.constant 0 : i32
    %c0_i32_1 = arith.constant 0 : i32
    return %c0_i32, %c0_i32_0 : i32, i32
  }
  func.func @transform_5(%arg0: i32) -> (i32, i32, i32) {
    %c0_i32 = arith.constant 0 : i32
    %c0_i32_0 = arith.constant 0 : i32
    %c0_i32_1 = arith.constant 0 : i32
    %c0_i32_2 = arith.constant 0 : i32
    return %c0_i32, %c0_i32_0, %c0_i32_1 : i32, i32, i32
  }
  func.func @transform_6(%arg0: i32) -> (i32, i32) {
    %c0_i32 = arith.constant 0 : i32
    %c0_i32_0 = arith.constant 0 : i32
    %c0_i32_1 = arith.constant 0 : i32
    return %c0_i32, %c0_i32_0 : i32, i32
  }
  func.func @transform_7(%arg0: i32) -> (i32, i32) {
    %c0_i32 = arith.constant 0 : i32
    %c0_i32_0 = arith.constant 0 : i32
    %c0_i32_1 = arith.constant 0 : i32
    return %c0_i32, %c0_i32_0 : i32, i32
  }
  func.func @transform_8(%arg0: i32) -> (i32, i32) {
    %c0_i32 = arith.constant 0 : i32
    %c0_i32_0 = arith.constant 0 : i32
    %c0_i32_1 = arith.constant 0 : i32
    return %c0_i32, %c0_i32_0 : i32, i32
  }
  func.func @transform_9(%arg0: i32) -> (i32, i32) {
    %c0_i32 = arith.constant 0 : i32
    %c0_i32_0 = arith.constant 0 : i32
    return %arg0, %c0_i32 : i32, i32
  }
}

</mosaic_0001>

<llo_original>
// kernel: cnn_forward.1
$region0: #{cnn_forward.1}
  #allocation0 [shape = 'u32[]', space=smem, size = 0x4, offset = 0x4, fixed_abs, tag = 'smem constant byte address 0x4 - core index']
  #allocation1 [shape = 'u32[144,128]{1,0:T(1,128)}', space=vmem, size = 0x12000, scoped, tag = 'internal scratch']
  #allocation2 [shape = 'f32[128,128]{1,0:T(8,128)}', space=vmem, size = 0x10000, scoped, tag = 'scratch operand']
  #allocation3 [shape = 'f32[64,128]{1,0:T(8,128)}', space=vmem, size = 0x8000, scoped, tag = 'scratch operand']
  %s0 = inlined_call_operand.vmem [shape: bf16[1,224,96], index: 0, kind: input, shape index: {}]
  %s1 = inlined_call_operand.vmem [shape: bf16[96,256], index: 1, kind: input, shape index: {}]
  %s2 = inlined_call_operand.vmem [shape: f32[1,256], index: 2, kind: input, shape index: {}]
  %s3 = inlined_call_operand.vmem [shape: bf16[3,128,256], index: 3, kind: input, shape index: {}]
  %s4 = inlined_call_operand.vmem [shape: f32[1,256], index: 4, kind: input, shape index: {}]
  %s5 = inlined_call_operand.vmem [shape: bf16[3,128,256], index: 5, kind: input, shape index: {}]
  %s6 = inlined_call_operand.vmem [shape: f32[1,256], index: 6, kind: input, shape index: {}]
  %s7 = inlined_call_operand.vmem [shape: bf16[384,10], index: 7, kind: input, shape index: {}]
  %s8 = inlined_call_operand.vmem [shape: f32[1,10], index: 8, kind: input, shape index: {}]
  %s9 = inlined_call_operand.vmem [shape: f32[8,10], index: 9, kind: output, shape index: {}]
  %s10 = sld [smem:[#allocation0]]
  $region46: #{cnn_forward.1} parent=0
    _
  %s12 = ssub.s32 1, %s10
  %s13 = scalar_select 0, %s12, %s10
  // Predicated region
  $region2: #{cnn_forward.1} parent=0 // pred_check
    _
  $region3: #{cnn_forward.1} parent=0 // pred_check_branch
    %15 = sbr.rel (0) target = $region5
  $region4: #{cnn_forward.1} parent=0 // pred_region
    _
  $region5: #{cnn_forward.1} parent=0 // pred_fallthru
    _
  // Predicated region
  $region6: #{cnn_forward.1} parent=0 // pred_check
    _
  $region7: #{cnn_forward.1} parent=0 // pred_check_branch
    %17 = sbr.rel (0) target = $region9
  $region8: #{cnn_forward.1} parent=0 // pred_region
    _
  $region9: #{cnn_forward.1} parent=0 // pred_fallthru
    _
  // Predicated region
  $region10: #{cnn_forward.1} parent=0 // pred_check
    _
  $region11: #{cnn_forward.1} parent=0 // pred_check_branch
    %19 = sbr.rel (0) target = $region13
  $region12: #{cnn_forward.1} parent=0 // pred_region
    _
  $region13: #{cnn_forward.1} parent=0 // pred_fallthru
    _
  // Predicated region
  $region14: #{cnn_forward.1} parent=0 // pred_check
    _
  $region15: #{cnn_forward.1} parent=0 // pred_check_branch
    %21 = sbr.rel (0) target = $region17
  $region16: #{cnn_forward.1} parent=0 // pred_region
    _
  $region17: #{cnn_forward.1} parent=0 // pred_fallthru
    _
  // Predicated region
  $region18: #{cnn_forward.1} parent=0 // pred_check
    _
  $region19: #{cnn_forward.1} parent=0 // pred_check_branch
    %23 = sbr.rel (0) target = $region21
  $region20: #{cnn_forward.1} parent=0 // pred_region
    _
  $region21: #{cnn_forward.1} parent=0 // pred_fallthru
    _
  // Predicated region
  $region22: #{cnn_forward.1} parent=0 // pred_check
    _
  $region23: #{cnn_forward.1} parent=0 // pred_check_branch
    %25 = sbr.rel (0) target = $region25
  $region24: #{cnn_forward.1} parent=0 // pred_region
    _
  $region25: #{cnn_forward.1} parent=0 // pred_fallthru
    _
  // Predicated region
  $region26: #{cnn_forward.1} parent=0 // pred_check
    _
  $region27: #{cnn_forward.1} parent=0 // pred_check_branch
    %27 = sbr.rel (0) target = $region29
  $region28: #{cnn_forward.1} parent=0 // pred_region
    _
  $region29: #{cnn_forward.1} parent=0 // pred_fallthru
    _
  // Predicated region
  $region30: #{cnn_forward.1} parent=0 // pred_check
    _
  $region31: #{cnn_forward.1} parent=0 // pred_check_branch
    %29 = sbr.rel (0) target = $region33
  $region32: #{cnn_forward.1} parent=0 // pred_region
    _
  $region33: #{cnn_forward.1} parent=0 // pred_fallthru
    _
  // Predicated region
  $region34: #{cnn_forward.1} parent=0 // pred_check
    _
  $region35: #{cnn_forward.1} parent=0 // pred_check_branch
    %31 = sbr.rel (0) target = $region37
  $region36: #{cnn_forward.1} parent=0 // pred_region
    _
  $region37: #{cnn_forward.1} parent=0 // pred_fallthru
    _
  %33 = vst [vmem:[#allocation2] sm:$0xff] 0.0
  %34 = vst [vmem:[#allocation2 + $0x78] sm:$0xff] 0.0
  %35 = vst [vmem:[#allocation3] sm:$0xff] 0.0
  %v36 = vld [vmem:[%s0] sm:$0xf]
  %v37 = vld [vmem:[%s0 + $0x4] sm:$0xf]
  %v38 = vld [vmem:[%s0 + $0x8] sm:$0xf]
  %v39 = vld [vmem:[%s0 + $0xc] sm:$0xf]
  %v40 = vld [vmem:[%s0 + $0x10] sm:$0xf]
  %v41 = vld [vmem:[%s0 + $0x14] sm:$0xf]
  %v42 = vld [vmem:[%s0 + $0x18] sm:$0xf]
  %v43 = vld [vmem:[%s0 + $0x1c] sm:$0xf]
  %v44 = vld [vmem:[%s0 + $0x20] sm:$0xf]
  %v45 = vld [vmem:[%s0 + $0x24] sm:$0xf]
  %v46 = vld [vmem:[%s0 + $0x28] sm:$0xf]
  %v47 = vld [vmem:[%s0 + $0x2c] sm:$0xf]
  %v48 = vld [vmem:[%s0 + $0x30] sm:$0xf]
  %v49 = vld [vmem:[%s0 + $0x34] sm:$0xf]
  %v50 = vld [vmem:[%s0 + $0x38] sm:$0xf]
  %v51 = vld [vmem:[%s0 + $0x3c] sm:$0xf]
  %v52 = vld [vmem:[%s0 + $0x40] sm:$0xf]
  %v53 = vld [vmem:[%s0 + $0x44] sm:$0xf]
  %v54 = vld [vmem:[%s0 + $0x48] sm:$0xf]
  %v55 = vld [vmem:[%s0 + $0x4c] sm:$0xf]
  %v56 = vld [vmem:[%s0 + $0x50] sm:$0xf]
  %v57 = vld [vmem:[%s0 + $0x54] sm:$0xf]
  %v58 = vld [vmem:[%s0 + $0x58] sm:$0xf]
  %v59 = vld [vmem:[%s0 + $0x5c] sm:$0xf]
  %v60 = vld [vmem:[%s0 + $0x60] sm:$0xf]
  %v61 = vld [vmem:[%s0 + $0x64] sm:$0xf]
  %v62 = vld [vmem:[%s0 + $0x68] sm:$0xf]
  %v63 = vld [vmem:[%s0 + $0x6c] sm:$0xf]
  %v64 = vld [vmem:[%s1] sm:$0xff]
  %v65 = vld [vmem:[%s1 + $0x8] sm:$0xff]
  %v66 = vld [vmem:[%s1 + $0x10] sm:$0xff]
  %v67 = vld [vmem:[%s1 + $0x18] sm:$0xff]
  %v68 = vld [vmem:[%s1 + $0x20] sm:$0xff]
  %v69 = vld [vmem:[%s1 + $0x28] sm:$0xff]
  %v70 = vld [vmem:[%s1 + $0x30] sm:$0xff]
  %v71 = vld [vmem:[%s1 + $0x38] sm:$0xff]
  %v72 = vld [vmem:[%s1 + $0x40] sm:$0xff]
  %v73 = vld [vmem:[%s1 + $0x48] sm:$0xff]
  %v74 = vld [vmem:[%s1 + $0x50] sm:$0xff]
  %v75 = vld [vmem:[%s1 + $0x58] sm:$0xff]
  %v76 = vld [vmem:[%s2] sm:$0x3]
  %v78 = vlaneseq
  %v79 = vshrl.u32 %v78, 7
  %v80 = vsub.s32 0, %v79
  %v81 = vrot.slane %v76, %v80
  %v82 = vlaneseq
  %v83 = vshrl.u32 %v82, 7
  %v84 = vsub.s32 1, %v83
  %v85 = vrot.slane %v76, %v84
  %v116 = vunpack.c.l.b16 %v36
  %v117 = vunpack.c.l.b16 %v37
  %v118 = vunpack.c.l.b16 %v38
  %v119 = vunpack.c.l.b16 %v39
  %v120 = vunpack.c.l.b16 %v40
  %v121 = vunpack.c.l.b16 %v41
  %v122 = vunpack.c.l.b16 %v42
  %v123 = vunpack.c.l.b16 %v43
  %v124 = vunpack.c.l.b16 %v44
  %v125 = vunpack.c.l.b16 %v45
  %v126 = vunpack.c.l.b16 %v46
  %v127 = vunpack.c.l.b16 %v47
  %v128 = vunpack.c.l.b16 %v48
  %v129 = vunpack.c.l.b16 %v49
  %v130 = vunpack.c.l.b16 %v50
  %v131 = vunpack.c.l.b16 %v51
  %v132 = vunpack.c.l.b16 %v52
  %v133 = vunpack.c.l.b16 %v53
  %v134 = vunpack.c.l.b16 %v54
  %v135 = vunpack.c.l.b16 %v55
  %v136 = vunpack.c.l.b16 %v56
  %v137 = vunpack.c.l.b16 %v57
  %v138 = vunpack.c.l.b16 %v58
  %v139 = vunpack.c.l.b16 %v59
  %v140 = vunpack.c.l.b16 %v60
  %v141 = vunpack.c.l.b16 %v61
  %v142 = vunpack.c.l.b16 %v62
  %v143 = vunpack.c.l.b16 %v63
  %v144 = vpack.c.b16 %v117, %v116
  %v145 = vpack.c.b16 %v119, %v118
  %v146 = vpack.c.b16 %v121, %v120
  %v147 = vpack.c.b16 %v123, %v122
  %v148 = vpack.c.b16 %v125, %v124
  %v149 = vpack.c.b16 %v127, %v126
  %v150 = vpack.c.b16 %v129, %v128
  %v151 = vpack.c.b16 %v131, %v130
  %v152 = vpack.c.b16 %v133, %v132
  %v153 = vpack.c.b16 %v135, %v134
  %v154 = vpack.c.b16 %v137, %v136
  %v155 = vpack.c.b16 %v139, %v138
  %v156 = vpack.c.b16 %v141, %v140
  %v157 = vpack.c.b16 %v143, %v142
  %v170 = vunpack.c.l.b16 %v64
  %v171 = vunpack.c.h.b16 %v64
  %v172 = vunpack.c.l.b16 %v65
  %v173 = vunpack.c.h.b16 %v65
  %v174 = vunpack.c.l.b16 %v66
  %v175 = vunpack.c.h.b16 %v66
  %v176 = vunpack.c.l.b16 %v67
  %v177 = vunpack.c.h.b16 %v67
  %v178 = vunpack.c.l.b16 %v68
  %v179 = vunpack.c.h.b16 %v68
  %v180 = vunpack.c.l.b16 %v69
  %v181 = vunpack.c.h.b16 %v69
  %v182 = vunpack.c.l.b16 %v70
  %v183 = vunpack.c.h.b16 %v70
  %v184 = vunpack.c.l.b16 %v71
  %v185 = vunpack.c.h.b16 %v71
  %v186 = vunpack.c.l.b16 %v72
  %v187 = vunpack.c.h.b16 %v72
  %v188 = vunpack.c.l.b16 %v73
  %v189 = vunpack.c.h.b16 %v73
  %v190 = vunpack.c.l.b16 %v74
  %v191 = vunpack.c.h.b16 %v74
  %v192 = vunpack.c.l.b16 %v75
  %v193 = vunpack.c.h.b16 %v75
  %v194 = vpack.c.b16 %v172, %v170
  %v195 = vpack.c.b16 %v173, %v171
  %v196 = vpack.c.b16 %v176, %v174
  %v197 = vpack.c.b16 %v177, %v175
  %v198 = vpack.c.b16 %v180, %v178
  %v199 = vpack.c.b16 %v181, %v179
  %v200 = vpack.c.b16 %v184, %v182
  %v201 = vpack.c.b16 %v185, %v183
  %v202 = vpack.c.b16 %v188, %v186
  %v203 = vpack.c.b16 %v189, %v187
  %v204 = vpack.c.b16 %v192, %v190
  %v205 = vpack.c.b16 %v193, %v191
  %vm218 = vcmask 785408
  %v220 = vsel %vm218, %v144, 0
  %v223 = vsel %vm218, %v145, 0
  %v226 = vsel %vm218, %v146, 0
  %v229 = vsel %vm218, %v147, 0
  %v232 = vsel %vm218, %v148, 0
  %v235 = vsel %vm218, %v149, 0
  %v238 = vsel %vm218, %v150, 0
  %v241 = vsel %vm218, %v151, 0
  %v244 = vsel %vm218, %v152, 0
  %v247 = vsel %vm218, %v153, 0
  %v250 = vsel %vm218, %v154, 0
  %v253 = vsel %vm218, %v155, 0
  %v256 = vsel %vm218, %v156, 0
  %v259 = vsel %vm218, %v157, 0
  %261 = vmatprep.subr.bf16.mxu0 %v195
  %262 = vmatpush1.bf16.msra.mxu0 %v194
  %263 = vmatprep.subr.bf16.mxu0 %v197
  %264 = vmatpush1.bf16.msra.mxu0 %v196
  %265 = vmatprep.subr.bf16.mxu0 %v199
  %266 = vmatpush1.bf16.msra.mxu0 %v198
  %267 = vmatprep.subr.bf16.mxu0 %v201
  %268 = vmatpush1.bf16.msra.mxu0 %v200
  %269 = vmatprep.subr.bf16.mxu0 %v203
  %270 = vmatpush1.bf16.msra.mxu0 %v202
  %271 = vmatprep.subr.bf16.mxu0 %v205
  %272 = vmatpush1.bf16.msra.mxu0 %v204
  %273 = vmatprep.subr.bf16.mxu0 0
  %274 = vmatpush1.bf16.msra.mxu0 0
  %275 = vmatprep.subr.bf16.mxu0 0
  %276 = vmatpush1.bf16.msra.mxu0 0
  %277 = vmatprep.subr.bf16.mxu0 0
  %278 = vmatpush1.bf16.msra.mxu0 0
  %279 = vmatprep.subr.bf16.mxu0 0
  %280 = vmatpush1.bf16.msra.mxu0 0
  %281 = vmatprep.subr.bf16.mxu0 0
  %282 = vmatpush1.bf16.msra.mxu0 0
  %283 = vmatprep.subr.bf16.mxu0 0
  %284 = vmatpush1.bf16.msra.mxu0 0
  %285 = vmatprep.subr.bf16.mxu0 0
  %286 = vmatpush1.bf16.msra.mxu0 0
  %287 = vmatprep.subr.bf16.mxu0 0
  %288 = vmatpush1.bf16.msra.mxu0 0
  %289 = vmatprep.subr.bf16.mxu0 0
  %290 = vmatpush1.bf16.msra.mxu0 0
  %291 = vmatprep.subr.bf16.mxu0 0
  %292 = vmatpush1.bf16.msra.mxu0 0
  %293 = vmatprep.mubr.bf16.mxu0 0
  %294 = vmatmul.mubr.bf16.gmra.mrb[0].mxu0 %v220
  %v295 = vpop.f32.mrb[0].mxu0
  %v296 = vadd.f32 %v81, %v295
  %v297 = vpop.f32.mrb[0].mxu0
  %v298 = vadd.f32 %v85, %v297
  %v299 = vpop.f32.mrb[0].mxu0
  %v300 = vadd.f32 %v81, %v299
  %v301 = vpop.f32.mrb[0].mxu0
  %v302 = vadd.f32 %v85, %v301
  %303 = vmatprep.mubr.bf16.mxu0 0
  %304 = vmatmul.mubr.bf16.gmra.mrb[0].mxu0 %v223
  %v305 = vpop.f32.mrb[0].mxu0
  %v306 = vadd.f32 %v81, %v305
  %v307 = vpop.f32.mrb[0].mxu0
  %v308 = vadd.f32 %v85, %v307
  %v309 = vpop.f32.mrb[0].mxu0
  %v310 = vadd.f32 %v81, %v309
  %v311 = vpop.f32.mrb[0].mxu0
  %v312 = vadd.f32 %v85, %v311
  %313 = vmatprep.mubr.bf16.mxu0 0
  %314 = vmatmul.mubr.bf16.gmra.mrb[0].mxu0 %v226
  %v315 = vpop.f32.mrb[0].mxu0
  %v316 = vadd.f32 %v81, %v315
  %v317 = vpop.f32.mrb[0].mxu0
  %v318 = vadd.f32 %v85, %v317
  %v319 = vpop.f32.mrb[0].mxu0
  %v320 = vadd.f32 %v81, %v319
  %v321 = vpop.f32.mrb[0].mxu0
  %v322 = vadd.f32 %v85, %v321
  %323 = vmatprep.mubr.bf16.mxu0 0
  %324 = vmatmul.mubr.bf16.gmra.mrb[0].mxu0 %v229
  %v325 = vpop.f32.mrb[0].mxu0
  %v326 = vadd.f32 %v81, %v325
  %v327 = vpop.f32.mrb[0].mxu0
  %v328 = vadd.f32 %v85, %v327
  %v329 = vpop.f32.mrb[0].mxu0
  %v330 = vadd.f32 %v81, %v329
  %v331 = vpop.f32.mrb[0].mxu0
  %v332 = vadd.f32 %v85, %v331
  %333 = vmatprep.mubr.bf16.mxu0 0
  %334 = vmatmul.mubr.bf16.gmra.mrb[0].mxu0 %v232
  %v335 = vpop.f32.mrb[0].mxu0
  %v336 = vadd.f32 %v81, %v335
  %v337 = vpop.f32.mrb[0].mxu0
  %v338 = vadd.f32 %v85, %v337
  %v339 = vpop.f32.mrb[0].mxu0
  %v340 = vadd.f32 %v81, %v339
  %v341 = vpop.f32.mrb[0].mxu0
  %v342 = vadd.f32 %v85, %v341
  %343 = vmatprep.mubr.bf16.mxu0 0
  %344 = vmatmul.mubr.bf16.gmra.mrb[0].mxu0 %v235
  %v345 = vpop.f32.mrb[0].mxu0
  %v346 = vadd.f32 %v81, %v345
  %v347 = vpop.f32.mrb[0].mxu0
  %v348 = vadd.f32 %v85, %v347
  %v349 = vpop.f32.mrb[0].mxu0
  %v350 = vadd.f32 %v81, %v349
  %v351 = vpop.f32.mrb[0].mxu0
  %v352 = vadd.f32 %v85, %v351
  %353 = vmatprep.mubr.bf16.mxu0 0
  %354 = vmatmul.mubr.bf16.gmra.mrb[0].mxu0 %v238
  %v355 = vpop.f32.mrb[0].mxu0
  %v356 = vadd.f32 %v81, %v355
  %v357 = vpop.f32.mrb[0].mxu0
  %v358 = vadd.f32 %v85, %v357
  %v359 = vpop.f32.mrb[0].mxu0
  %v360 = vadd.f32 %v81, %v359
  %v361 = vpop.f32.mrb[0].mxu0
  %v362 = vadd.f32 %v85, %v361
  %363 = vmatprep.mubr.bf16.mxu0 0
  %364 = vmatmul.mubr.bf16.gmra.mrb[0].mxu0 %v241
  %v365 = vpop.f32.mrb[0].mxu0
  %v366 = vadd.f32 %v81, %v365
  %v367 = vpop.f32.mrb[0].mxu0
  %v368 = vadd.f32 %v85, %v367
  %v369 = vpop.f32.mrb[0].mxu0
  %v370 = vadd.f32 %v81, %v369
  %v371 = vpop.f32.mrb[0].mxu0
  %v372 = vadd.f32 %v85, %v371
  %373 = vmatprep.mubr.bf16.mxu0 0
  %374 = vmatmul.mubr.bf16.gmra.mrb[0].mxu0 %v244
  %v375 = vpop.f32.mrb[0].mxu0
  %v376 = vadd.f32 %v81, %v375
  %v377 = vpop.f32.mrb[0].mxu0
  %v378 = vadd.f32 %v85, %v377
  %v379 = vpop.f32.mrb[0].mxu0
  %v380 = vadd.f32 %v81, %v379
  %v381 = vpop.f32.mrb[0].mxu0
  %v382 = vadd.f32 %v85, %v381
  %383 = vmatprep.mubr.bf16.mxu0 0
  %384 = vmatmul.mubr.bf16.gmra.mrb[0].mxu0 %v247
  %v385 = vpop.f32.mrb[0].mxu0
  %v386 = vadd.f32 %v81, %v385
  %v387 = vpop.f32.mrb[0].mxu0
  %v388 = vadd.f32 %v85, %v387
  %v389 = vpop.f32.mrb[0].mxu0
  %v390 = vadd.f32 %v81, %v389
  %v391 = vpop.f32.mrb[0].mxu0
  %v392 = vadd.f32 %v85, %v391
  %393 = vmatprep.mubr.bf16.mxu0 0
  %394 = vmatmul.mubr.bf16.gmra.mrb[0].mxu0 %v250
  %v395 = vpop.f32.mrb[0].mxu0
  %v396 = vadd.f32 %v81, %v395
  %v397 = vpop.f32.mrb[0].mxu0
  %v398 = vadd.f32 %v85, %v397
  %v399 = vpop.f32.mrb[0].mxu0
  %v400 = vadd.f32 %v81, %v399
  %v401 = vpop.f32.mrb[0].mxu0
  %v402 = vadd.f32 %v85, %v401
  %403 = vmatprep.mubr.bf16.mxu0 0
  %404 = vmatmul.mubr.bf16.gmra.mrb[0].mxu0 %v253
  %v405 = vpop.f32.mrb[0].mxu0
  %v406 = vadd.f32 %v81, %v405
  %v407 = vpop.f32.mrb[0].mxu0
  %v408 = vadd.f32 %v85, %v407
  %v409 = vpop.f32.mrb[0].mxu0
  %v410 = vadd.f32 %v81, %v409
  %v411 = vpop.f32.mrb[0].mxu0
  %v412 = vadd.f32 %v85, %v411
  %413 = vmatprep.mubr.bf16.mxu0 0
  %414 = vmatmul.mubr.bf16.gmra.mrb[0].mxu0 %v256
  %v415 = vpop.f32.mrb[0].mxu0
  %v416 = vadd.f32 %v81, %v415
  %v417 = vpop.f32.mrb[0].mxu0
  %v418 = vadd.f32 %v85, %v417
  %v419 = vpop.f32.mrb[0].mxu0
  %v420 = vadd.f32 %v81, %v419
  %v421 = vpop.f32.mrb[0].mxu0
  %v422 = vadd.f32 %v85, %v421
  %423 = vmatprep.mubr.bf16.mxu0 0
  %424 = vmatmul.mubr.bf16.gmra.mrb[0].mxu0 %v259
  %v425 = vpop.f32.mrb[0].mxu0
  %v426 = vadd.f32 %v81, %v425
  %v427 = vpop.f32.mrb[0].mxu0
  %v428 = vadd.f32 %v85, %v427
  %v429 = vpop.f32.mrb[0].mxu0
  %v430 = vadd.f32 %v81, %v429
  %v431 = vpop.f32.mrb[0].mxu0
  %v432 = vadd.f32 %v85, %v431
  %433 = vdwg.mxu0
  %v434 = vmax.f32 %v296, 0.0
  %v435 = vmax.f32 %v298, 0.0
  %v436 = vmax.f32 %v300, 0.0
  %v437 = vmax.f32 %v302, 0.0
  %v438 = vmax.f32 %v306, 0.0
  %v439 = vmax.f32 %v308, 0.0
  %v440 = vmax.f32 %v310, 0.0
  %v441 = vmax.f32 %v312, 0.0
  %v442 = vmax.f32 %v316, 0.0
  %v443 = vmax.f32 %v318, 0.0
  %v444 = vmax.f32 %v320, 0.0
  %v445 = vmax.f32 %v322, 0.0
  %v446 = vmax.f32 %v326, 0.0
  %v447 = vmax.f32 %v328, 0.0
  %v448 = vmax.f32 %v330, 0.0
  %v449 = vmax.f32 %v332, 0.0
  %v450 = vmax.f32 %v336, 0.0
  %v451 = vmax.f32 %v338, 0.0
  %v452 = vmax.f32 %v340, 0.0
  %v453 = vmax.f32 %v342, 0.0
  %v454 = vmax.f32 %v346, 0.0
  %v455 = vmax.f32 %v348, 0.0
  %v456 = vmax.f32 %v350, 0.0
  %v457 = vmax.f32 %v352, 0.0
  %v458 = vmax.f32 %v356, 0.0
  %v459 = vmax.f32 %v358, 0.0
  %v460 = vmax.f32 %v360, 0.0
  %v461 = vmax.f32 %v362, 0.0
  %v462 = vmax.f32 %v366, 0.0
  %v463 = vmax.f32 %v368, 0.0
  %v464 = vmax.f32 %v370, 0.0
  %v465 = vmax.f32 %v372, 0.0
  %v466 = vmax.f32 %v376, 0.0
  %v467 = vmax.f32 %v378, 0.0
  %v468 = vmax.f32 %v380, 0.0
  %v469 = vmax.f32 %v382, 0.0
  %v470 = vmax.f32 %v386, 0.0
  %v471 = vmax.f32 %v388, 0.0
  %v472 = vmax.f32 %v390, 0.0
  %v473 = vmax.f32 %v392, 0.0
  %v474 = vmax.f32 %v396, 0.0
  %v475 = vmax.f32 %v398, 0.0
  %v476 = vmax.f32 %v400, 0.0
  %v477 = vmax.f32 %v402, 0.0
  %v478 = vmax.f32 %v406, 0.0
  %v479 = vmax.f32 %v408, 0.0
  %v480 = vmax.f32 %v410, 0.0
  %v481 = vmax.f32 %v412, 0.0
  %v482 = vmax.f32 %v416, 0.0
  %v483 = vmax.f32 %v418, 0.0
  %v484 = vmax.f32 %v420, 0.0
  %v485 = vmax.f32 %v422, 0.0
  %v486 = vmax.f32 %v426, 0.0
  %v487 = vmax.f32 %v428, 0.0
  %v488 = vmax.f32 %v430, 0.0
  %v489 = vmax.f32 %v432, 0.0
  %v490 = vmax.f32 %v434, %v435
  %v491 = vmax.f32 %v436, %v437
  %v492 = vmax.f32 %v438, %v439
  %v493 = vmax.f32 %v440, %v441
  %v494 = vmax.f32 %v442, %v443
  %v495 = vmax.f32 %v444, %v445
  %v496 = vmax.f32 %v446, %v447
  %v497 = vmax.f32 %v448, %v449
  %v498 = vmax.f32 %v450, %v451
  %v499 = vmax.f32 %v452, %v453
  %v500 = vmax.f32 %v454, %v455
  %v501 = vmax.f32 %v456, %v457
  %v502 = vmax.f32 %v458, %v459
  %v503 = vmax.f32 %v460, %v461
  %v504 = vmax.f32 %v462, %v463
  %v505 = vmax.f32 %v464, %v465
  %v506 = vmax.f32 %v466, %v467
  %v507 = vmax.f32 %v468, %v469
  %v508 = vmax.f32 %v470, %v471
  %v509 = vmax.f32 %v472, %v473
  %v510 = vmax.f32 %v474, %v475
  %v511 = vmax.f32 %v476, %v477
  %v512 = vmax.f32 %v478, %v479
  %v513 = vmax.f32 %v480, %v481
  %v514 = vmax.f32 %v482, %v483
  %v515 = vmax.f32 %v484, %v485
  %v516 = vmax.f32 %v486, %v487
  %v517 = vmax.f32 %v488, %v489
  %v518 = vmax.f32 %v490, %v491
  %519 = vst [vmem:[#allocation2 + $0x8] sm:$0xff] %v518
  %v520 = vmax.f32 %v492, %v493
  %521 = vst [vmem:[#allocation2 + $0x10] sm:$0xff] %v520
  %v522 = vmax.f32 %v494, %v495
  %523 = vst [vmem:[#allocation2 + $0x18] sm:$0xff] %v522
  %v524 = vmax.f32 %v496, %v497
  %525 = vst [vmem:[#allocation2 + $0x20] sm:$0xff] %v524
  %v526 = vmax.f32 %v498, %v499
  %527 = vst [vmem:[#allocation2 + $0x28] sm:$0xff] %v526
  %v528 = vmax.f32 %v500, %v501
  %529 = vst [vmem:[#allocation2 + $0x30] sm:$0xff] %v528
  %v530 = vmax.f32 %v502, %v503
  %531 = vst [vmem:[#allocation2 + $0x38] sm:$0xff] %v530
  %v532 = vmax.f32 %v504, %v505
  %533 = vst [vmem:[#allocation2 + $0x40] sm:$0xff] %v532
  %v534 = vmax.f32 %v506, %v507
  %535 = vst [vmem:[#allocation2 + $0x48] sm:$0xff] %v534
  %v536 = vmax.f32 %v508, %v509
  %537 = vst [vmem:[#allocation2 + $0x50] sm:$0xff] %v536
  %v538 = vmax.f32 %v510, %v511
  %539 = vst [vmem:[#allocation2 + $0x58] sm:$0xff] %v538
  %v540 = vmax.f32 %v512, %v513
  %541 = vst [vmem:[#allocation2 + $0x60] sm:$0xff] %v540
  %v542 = vmax.f32 %v514, %v515
  %543 = vst [vmem:[#allocation2 + $0x68] sm:$0xff] %v542
  %v544 = vmax.f32 %v516, %v517
  %545 = vst [vmem:[#allocation2 + $0x70] sm:$0xff] %v544
  %v546 = vld [vmem:[#allocation2] sm:$0xff]
  %v547 = vld [vmem:[#allocation2 + $0x8] sm:$0xff]
  %v548 = vld [vmem:[#allocation2 + $0x10] sm:$0xff]
  %v549 = vld [vmem:[#allocation2 + $0x18] sm:$0xff]
  %v550 = vld [vmem:[#allocation2 + $0x20] sm:$0xff]
  %v551 = vld [vmem:[#allocation2 + $0x28] sm:$0xff]
  %v552 = vld [vmem:[#allocation2 + $0x30] sm:$0xff]
  %v553 = vld [vmem:[#allocation2 + $0x38] sm:$0xff]
  %v554 = vld [vmem:[#allocation2 + $0x40] sm:$0xff]
  %v555 = vld [vmem:[#allocation2 + $0x48] sm:$0xff]
  %v556 = vld [vmem:[#allocation2 + $0x50] sm:$0xff]
  %v557 = vld [vmem:[#allocation2 + $0x58] sm:$0xff]
  %v558 = vld [vmem:[#allocation2 + $0x60] sm:$0xff]
  %v559 = vld [vmem:[#allocation2 + $0x68] sm:$0xff]
  %v560 = vpack.c.bf16 %v547, %v546
  %v561 = vpack.c.bf16 %v549, %v548
  %v562 = vpack.c.bf16 %v551, %v550
  %v563 = vpack.c.bf16 %v553, %v552
  %v564 = vpack.c.bf16 %v555, %v554
  %v565 = vpack.c.bf16 %v557, %v556
  %v566 = vpack.c.bf16 %v559, %v558
  %v567 = vld [vmem:[%s3] sm:$0xff]
  %v568 = vld [vmem:[%s3 + $0x8] sm:$0xff]
  %v569 = vld [vmem:[%s3 + $0x10] sm:$0xff]
  %v570 = vld [vmem:[%s3 + $0x18] sm:$0xff]
  %v571 = vld [vmem:[%s3 + $0x20] sm:$0xff]
  %v572 = vld [vmem:[%s3 + $0x28] sm:$0xff]
  %v573 = vld [vmem:[%s3 + $0x30] sm:$0xff]
  %v574 = vld [vmem:[%s3 + $0x38] sm:$0xff]
  %v575 = vld [vmem:[%s3 + $0x40] sm:$0xff]
  %v576 = vld [vmem:[%s3 + $0x48] sm:$0xff]
  %v577 = vld [vmem:[%s3 + $0x50] sm:$0xff]
  %v578 = vld [vmem:[%s3 + $0x58] sm:$0xff]
  %v579 = vld [vmem:[%s3 + $0x60] sm:$0xff]
  %v580 = vld [vmem:[%s3 + $0x68] sm:$0xff]
  %v581 = vld [vmem:[%s3 + $0x70] sm:$0xff]
  %v582 = vld [vmem:[%s3 + $0x78] sm:$0xff]
  %v583 = vld [vmem:[#allocation2 + $0x70] sm:$0xff]
  %v584 = vpack.c.bf16 %v548, %v547
  %v585 = vpack.c.bf16 %v550, %v549
  %v586 = vpack.c.bf16 %v552, %v551
  %v587 = vpack.c.bf16 %v554, %v553
  %v588 = vpack.c.bf16 %v556, %v555
  %v589 = vpack.c.bf16 %v558, %v557
  %v590 = vpack.c.bf16 %v583, %v559
  %s591 = scalar_lea.vmem %s3, 128
  %v592 = vld [vmem:[%s591] sm:$0xff]
  %v593 = vld [vmem:[%s591 + $0x8] sm:$0xff]
  %v594 = vld [vmem:[%s591 + $0x10] sm:$0xff]
  %v595 = vld [vmem:[%s591 + $0x18] sm:$0xff]
  %v596 = vld [vmem:[%s591 + $0x20] sm:$0xff]
  %v597 = vld [vmem:[%s591 + $0x28] sm:$0xff]
  %v598 = vld [vmem:[%s591 + $0x30] sm:$0xff]
  %v599 = vld [vmem:[%s591 + $0x38] sm:$0xff]
  %v600 = vld [vmem:[%s591 + $0x40] sm:$0xff]
  %v601 = vld [vmem:[%s591 + $0x48] sm:$0xff]
  %v602 = vld [vmem:[%s591 + $0x50] sm:$0xff]
  %v603 = vld [vmem:[%s591 + $0x58] sm:$0xff]
  %v604 = vld [vmem:[%s591 + $0x60] sm:$0xff]
  %v605 = vld [vmem:[%s591 + $0x68] sm:$0xff]
  %v606 = vld [vmem:[%s591 + $0x70] sm:$0xff]
  %v607 = vld [vmem:[%s591 + $0x78] sm:$0xff]
  %v624 = vunpack.c.l.b16 %v592
  %v625 = vunpack.c.h.b16 %v592
  %v626 = vunpack.c.l.b16 %v593
  %v627 = vunpack.c.h.b16 %v593
  %v628 = vunpack.c.l.b16 %v594
  %v629 = vunpack.c.h.b16 %v594
  %v630 = vunpack.c.l.b16 %v595
  %v631 = vunpack.c.h.b16 %v595
  %v632 = vunpack.c.l.b16 %v596
  %v633 = vunpack.c.h.b16 %v596
  %v634 = vunpack.c.l.b16 %v597
  %v635 = vunpack.c.h.b16 %v597
  %v636 = vunpack.c.l.b16 %v598
  %v637 = vunpack.c.h.b16 %v598
  %v638 = vunpack.c.l.b16 %v599
  %v639 = vunpack.c.h.b16 %v599
  %v640 = vunpack.c.l.b16 %v600
  %v641 = vunpack.c.h.b16 %v600
  %v642 = vunpack.c.l.b16 %v601
  %v643 = vunpack.c.h.b16 %v601
  %v644 = vunpack.c.l.b16 %v602
  %v645 = vunpack.c.h.b16 %v602
  %v646 = vunpack.c.l.b16 %v603
  %v647 = vunpack.c.h.b16 %v603
  %v648 = vunpack.c.l.b16 %v604
  %v649 = vunpack.c.h.b16 %v604
  %v650 = vunpack.c.l.b16 %v605
  %v651 = vunpack.c.h.b16 %v605
  %v652 = vunpack.c.l.b16 %v606
  %v653 = vunpack.c.h.b16 %v606
  %v654 = vunpack.c.l.b16 %v607
  %v655 = vunpack.c.h.b16 %v607
  %v656 = vpack.c.b16 %v626, %v624
  %v657 = vpack.c.b16 %v627, %v625
  %v658 = vpack.c.b16 %v630, %v628
  %v659 = vpack.c.b16 %v631, %v629
  %v660 = vpack.c.b16 %v634, %v632
  %v661 = vpack.c.b16 %v635, %v633
  %v662 = vpack.c.b16 %v638, %v636
  %v663 = vpack.c.b16 %v639, %v637
  %v664 = vpack.c.b16 %v642, %v640
  %v665 = vpack.c.b16 %v643, %v641
  %v666 = vpack.c.b16 %v646, %v644
  %v667 = vpack.c.b16 %v647, %v645
  %v668 = vpack.c.b16 %v650, %v648
  %v669 = vpack.c.b16 %v651, %v649
  %v670 = vpack.c.b16 %v654, %v652
  %v671 = vpack.c.b16 %v655, %v653
  %688 = vmatprep.subr.bf16.mxu0 %v657
  %689 = vmatpush1.bf16.msra.mxu0 %v656
  %690 = vmatprep.subr.bf16.mxu0 %v659
  %691 = vmatpush1.bf16.msra.mxu0 %v658
  %692 = vmatprep.subr.bf16.mxu0 %v661
  %693 = vmatpush1.bf16.msra.mxu0 %v660
  %694 = vmatprep.subr.bf16.mxu0 %v663
  %695 = vmatpush1.bf16.msra.mxu0 %v662
  %696 = vmatprep.subr.bf16.mxu0 %v665
  %697 = vmatpush1.bf16.msra.mxu0 %v664
  %698 = vmatprep.subr.bf16.mxu0 %v667
  %699 = vmatpush1.bf16.msra.mxu0 %v666
  %700 = vmatprep.subr.bf16.mxu0 %v669
  %701 = vmatpush1.bf16.msra.mxu0 %v668
  %702 = vmatprep.subr.bf16.mxu0 %v671
  %703 = vmatpush1.bf16.msra.mxu0 %v670
  %704 = vmatprep.subr.bf16.mxu0 0
  %705 = vmatpush1.bf16.msra.mxu0 0
  %706 = vmatprep.subr.bf16.mxu0 0
  %707 = vmatpush1.bf16.msra.mxu0 0
  %708 = vmatprep.subr.bf16.mxu0 0
  %709 = vmatpush1.bf16.msra.mxu0 0
  %710 = vmatprep.subr.bf16.mxu0 0
  %711 = vmatpush1.bf16.msra.mxu0 0
  %712 = vmatprep.subr.bf16.mxu0 0
  %713 = vmatpush1.bf16.msra.mxu0 0
  %714 = vmatprep.subr.bf16.mxu0 0
  %715 = vmatpush1.bf16.msra.mxu0 0
  %716 = vmatprep.subr.bf16.mxu0 0
  %717 = vmatpush1.bf16.msra.mxu0 0
  %718 = vmatprep.subr.bf16.mxu0 0
  %719 = vmatpush1.bf16.msra.mxu0 0
  %720 = vmatprep.mubr.bf16.mxu0 0
  %721 = vmatmul.mubr.bf16.gmra.mrb[0].mxu0 %v584
  %v722 = vpop.f32.mrb[0].mxu0
  %v723 = vadd.f32 0.0, %v722
  %v724 = vpop.f32.mrb[0].mxu0
  %v725 = vadd.f32 0.0, %v724
  %v726 = vpop.f32.mrb[0].mxu0
  %v727 = vadd.f32 0.0, %v726
  %v728 = vpop.f32.mrb[0].mxu0
  %v729 = vadd.f32 0.0, %v728
  %730 = vmatprep.mubr.bf16.mxu0 0
  %731 = vmatmul.mubr.bf16.gmra.mrb[0].mxu0 %v585
  %v732 = vpop.f32.mrb[0].mxu0
  %v733 = vadd.f32 0.0, %v732
  %v734 = vpop.f32.mrb[0].mxu0
  %v735 = vadd.f32 0.0, %v734
  %v736 = vpop.f32.mrb[0].mxu0
  %v737 = vadd.f32 0.0, %v736
  %v738 = vpop.f32.mrb[0].mxu0
  %v739 = vadd.f32 0.0, %v738
  %740 = vmatprep.mubr.bf16.mxu0 0
  %741 = vmatmul.mubr.bf16.gmra.mrb[0].mxu0 %v586
  %v742 = vpop.f32.mrb[0].mxu0
  %v743 = vadd.f32 0.0, %v742
  %v744 = vpop.f32.mrb[0].mxu0
  %v745 = vadd.f32 0.0, %v744
  %v746 = vpop.f32.mrb[0].mxu0
  %v747 = vadd.f32 0.0, %v746
  %v748 = vpop.f32.mrb[0].mxu0
  %v749 = vadd.f32 0.0, %v748
  %750 = vmatprep.mubr.bf16.mxu0 0
  %751 = vmatmul.mubr.bf16.gmra.mrb[0].mxu0 %v587
  %v752 = vpop.f32.mrb[0].mxu0
  %v753 = vadd.f32 0.0, %v752
  %v754 = vpop.f32.mrb[0].mxu0
  %v755 = vadd.f32 0.0, %v754
  %v756 = vpop.f32.mrb[0].mxu0
  %v757 = vadd.f32 0.0, %v756
  %v758 = vpop.f32.mrb[0].mxu0
  %v759 = vadd.f32 0.0, %v758
  %760 = vmatprep.mubr.bf16.mxu0 0
  %761 = vmatmul.mubr.bf16.gmra.mrb[0].mxu0 %v588
  %v762 = vpop.f32.mrb[0].mxu0
  %v763 = vadd.f32 0.0, %v762
  %v764 = vpop.f32.mrb[0].mxu0
  %v765 = vadd.f32 0.0, %v764
  %v766 = vpop.f32.mrb[0].mxu0
  %v767 = vadd.f32 0.0, %v766
  %v768 = vpop.f32.mrb[0].mxu0
  %v769 = vadd.f32 0.0, %v768
  %770 = vmatprep.mubr.bf16.mxu0 0
  %771 = vmatmul.mubr.bf16.gmra.mrb[0].mxu0 %v589
  %v772 = vpop.f32.mrb[0].mxu0
  %v773 = vadd.f32 0.0, %v772
  %v774 = vpop.f32.mrb[0].mxu0
  %v775 = vadd.f32 0.0, %v774
  %v776 = vpop.f32.mrb[0].mxu0
  %v777 = vadd.f32 0.0, %v776
  %v778 = vpop.f32.mrb[0].mxu0
  %v779 = vadd.f32 0.0, %v778
  %780 = vmatprep.mubr.bf16.mxu0 0
  %781 = vmatmul.mubr.bf16.gmra.mrb[0].mxu0 %v590
  %v782 = vpop.f32.mrb[0].mxu0
  %v783 = vadd.f32 0.0, %v782
  %v784 = vpop.f32.mrb[0].mxu0
  %v785 = vadd.f32 0.0, %v784
  %v786 = vpop.f32.mrb[0].mxu0
  %v787 = vadd.f32 0.0, %v786
  %v788 = vpop.f32.mrb[0].mxu0
  %v789 = vadd.f32 0.0, %v788
  %790 = vdwg.mxu0
  %v807 = vunpack.c.l.b16 %v567
  %v808 = vunpack.c.h.b16 %v567
  %v809 = vunpack.c.l.b16 %v568
  %v810 = vunpack.c.h.b16 %v568
  %v811 = vunpack.c.l.b16 %v569
  %v812 = vunpack.c.h.b16 %v569
  %v813 = vunpack.c.l.b16 %v570
  %v814 = vunpack.c.h.b16 %v570
  %v815 = vunpack.c.l.b16 %v571
  %v816 = vunpack.c.h.b16 %v571
  %v817 = vunpack.c.l.b16 %v572
  %v818 = vunpack.c.h.b16 %v572
  %v819 = vunpack.c.l.b16 %v573
  %v820 = vunpack.c.h.b16 %v573
  %v821 = vunpack.c.l.b16 %v574
  %v822 = vunpack.c.h.b16 %v574
  %v823 = vunpack.c.l.b16 %v575
  %v824 = vunpack.c.h.b16 %v575
  %v825 = vunpack.c.l.b16 %v576
  %v826 = vunpack.c.h.b16 %v576
  %v827 = vunpack.c.l.b16 %v577
  %v828 = vunpack.c.h.b16 %v577
  %v829 = vunpack.c.l.b16 %v578
  %v830 = vunpack.c.h.b16 %v578
  %v831 = vunpack.c.l.b16 %v579
  %v832 = vunpack.c.h.b16 %v579
  %v833 = vunpack.c.l.b16 %v580
  %v834 = vunpack.c.h.b16 %v580
  %v835 = vunpack.c.l.b16 %v581
  %v836 = vunpack.c.h.b16 %v581
  %v837 = vunpack.c.l.b16 %v582
  %v838 = vunpack.c.h.b16 %v582
  %v839 = vpack.c.b16 %v809, %v807
  %v840 = vpack.c.b16 %v810, %v808
  %v841 = vpack.c.b16 %v813, %v811
  %v842 = vpack.c.b16 %v814, %v812
  %v843 = vpack.c.b16 %v817, %v815
  %v844 = vpack.c.b16 %v818, %v816
  %v845 = vpack.c.b16 %v821, %v819
  %v846 = vpack.c.b16 %v822, %v820
  %v847 = vpack.c.b16 %v825, %v823
  %v848 = vpack.c.b16 %v826, %v824
  %v849 = vpack.c.b16 %v829, %v827
  %v850 = vpack.c.b16 %v830, %v828
  %v851 = vpack.c.b16 %v833, %v831
  %v852 = vpack.c.b16 %v834, %v832
  %v853 = vpack.c.b16 %v837, %v835
  %v854 = vpack.c.b16 %v838, %v836
  %871 = vmatprep.subr.bf16.mxu0 %v840
  %872 = vmatpush1.bf16.msra.mxu0 %v839
  %873 = vmatprep.subr.bf16.mxu0 %v842
  %874 = vmatpush1.bf16.msra.mxu0 %v841
  %875 = vmatprep.subr.bf16.mxu0 %v844
  %876 = vmatpush1.bf16.msra.mxu0 %v843
  %877 = vmatprep.subr.bf16.mxu0 %v846
  %878 = vmatpush1.bf16.msra.mxu0 %v845
  %879 = vmatprep.subr.bf16.mxu0 %v848
  %880 = vmatpush1.bf16.msra.mxu0 %v847
  %881 = vmatprep.subr.bf16.mxu0 %v850
  %882 = vmatpush1.bf16.msra.mxu0 %v849
  %883 = vmatprep.subr.bf16.mxu0 %v852
  %884 = vmatpush1.bf16.msra.mxu0 %v851
  %885 = vmatprep.subr.bf16.mxu0 %v854
  %886 = vmatpush1.bf16.msra.mxu0 %v853
  %887 = vmatprep.subr.bf16.mxu0 0
  %888 = vmatpush1.bf16.msra.mxu0 0
  %889 = vmatprep.subr.bf16.mxu0 0
  %890 = vmatpush1.bf16.msra.mxu0 0
  %891 = vmatprep.subr.bf16.mxu0 0
  %892 = vmatpush1.bf16.msra.mxu0 0
  %893 = vmatprep.subr.bf16.mxu0 0
  %894 = vmatpush1.bf16.msra.mxu0 0
  %895 = vmatprep.subr.bf16.mxu0 0
  %896 = vmatpush1.bf16.msra.mxu0 0
  %897 = vmatprep.subr.bf16.mxu0 0
  %898 = vmatpush1.bf16.msra.mxu0 0
  %899 = vmatprep.subr.bf16.mxu0 0
  %900 = vmatpush1.bf16.msra.mxu0 0
  %901 = vmatprep.subr.bf16.mxu0 0
  %902 = vmatpush1.bf16.msra.mxu0 0
  %903 = vmatprep.mubr.bf16.mxu0 0
  %904 = vmatmul.mubr.bf16.gmra.mrb[0].mxu0 %v560
  %v905 = vpop.f32.mrb[0].mxu0
  %v906 = vadd.f32 %v723, %v905
  %v907 = vpop.f32.mrb[0].mxu0
  %v908 = vadd.f32 %v725, %v907
  %v909 = vpop.f32.mrb[0].mxu0
  %v910 = vadd.f32 %v727, %v909
  %v911 = vpop.f32.mrb[0].mxu0
  %v912 = vadd.f32 %v729, %v911
  %913 = vmatprep.mubr.bf16.mxu0 0
  %914 = vmatmul.mubr.bf16.gmra.mrb[0].mxu0 %v561
  %v915 = vpop.f32.mrb[0].mxu0
  %v916 = vadd.f32 %v733, %v915
  %v917 = vpop.f32.mrb[0].mxu0
  %v918 = vadd.f32 %v735, %v917
  %v919 = vpop.f32.mrb[0].mxu0
  %v920 = vadd.f32 %v737, %v919
  %v921 = vpop.f32.mrb[0].mxu0
  %v922 = vadd.f32 %v739, %v921
  %923 = vmatprep.mubr.bf16.mxu0 0
  %924 = vmatmul.mubr.bf16.gmra.mrb[0].mxu0 %v562
  %v925 = vpop.f32.mrb[0].mxu0
  %v926 = vadd.f32 %v743, %v925
  %v927 = vpop.f32.mrb[0].mxu0
  %v928 = vadd.f32 %v745, %v927
  %v929 = vpop.f32.mrb[0].mxu0
  %v930 = vadd.f32 %v747, %v929
  %v931 = vpop.f32.mrb[0].mxu0
  %v932 = vadd.f32 %v749, %v931
  %933 = vmatprep.mubr.bf16.mxu0 0
  %934 = vmatmul.mubr.bf16.gmra.mrb[0].mxu0 %v563
  %v935 = vpop.f32.mrb[0].mxu0
  %v936 = vadd.f32 %v753, %v935
  %v937 = vpop.f32.mrb[0].mxu0
  %v938 = vadd.f32 %v755, %v937
  %v939 = vpop.f32.mrb[0].mxu0
  %v940 = vadd.f32 %v757, %v939
  %v941 = vpop.f32.mrb[0].mxu0
  %v942 = vadd.f32 %v759, %v941
  %943 = vmatprep.mubr.bf16.mxu0 0
  %944 = vmatmul.mubr.bf16.gmra.mrb[0].mxu0 %v564
  %v945 = vpop.f32.mrb[0].mxu0
  %v946 = vadd.f32 %v763, %v945
  %v947 = vpop.f32.mrb[0].mxu0
  %v948 = vadd.f32 %v765, %v947
  %v949 = vpop.f32.mrb[0].mxu0
  %v950 = vadd.f32 %v767, %v949
  %v951 = vpop.f32.mrb[0].mxu0
  %v952 = vadd.f32 %v769, %v951
  %953 = vmatprep.mubr.bf16.mxu0 0
  %954 = vmatmul.mubr.bf16.gmra.mrb[0].mxu0 %v565
  %v955 = vpop.f32.mrb[0].mxu0
  %v956 = vadd.f32 %v773, %v955
  %v957 = vpop.f32.mrb[0].mxu0
  %v958 = vadd.f32 %v775, %v957
  %v959 = vpop.f32.mrb[0].mxu0
  %v960 = vadd.f32 %v777, %v959
  %v961 = vpop.f32.mrb[0].mxu0
  %v962 = vadd.f32 %v779, %v961
  %963 = vmatprep.mubr.bf16.mxu0 0
  %964 = vmatmul.mubr.bf16.gmra.mrb[0].mxu0 %v566
  %v965 = vpop.f32.mrb[0].mxu0
  %v966 = vadd.f32 %v783, %v965
  %v967 = vpop.f32.mrb[0].mxu0
  %v968 = vadd.f32 %v785, %v967
  %v969 = vpop.f32.mrb[0].mxu0
  %v970 = vadd.f32 %v787, %v969
  %v971 = vpop.f32.mrb[0].mxu0
  %v972 = vadd.f32 %v789, %v971
  %973 = vdwg.mxu0
  %v974 = vld [vmem:[#allocation2 + $0x10] sm:$0xff]
  %v975 = vld [vmem:[#allocation2 + $0x18] sm:$0xff]
  %v976 = vld [vmem:[#allocation2 + $0x20] sm:$0xff]
  %v977 = vld [vmem:[#allocation2 + $0x28] sm:$0xff]
  %v978 = vld [vmem:[#allocation2 + $0x30] sm:$0xff]
  %v979 = vld [vmem:[#allocation2 + $0x38] sm:$0xff]
  %v980 = vld [vmem:[#allocation2 + $0x40] sm:$0xff]
  %v981 = vld [vmem:[#allocation2 + $0x48] sm:$0xff]
  %v982 = vld [vmem:[#allocation2 + $0x50] sm:$0xff]
  %v983 = vld [vmem:[#allocation2 + $0x58] sm:$0xff]
  %v984 = vld [vmem:[#allocation2 + $0x60] sm:$0xff]
  %v985 = vld [vmem:[#allocation2 + $0x68] sm:$0xff]
  %v986 = vld [vmem:[#allocation2 + $0x70] sm:$0xff]
  %v987 = vld [vmem:[#allocation2 + $0x78] sm:$0xff]
  %v988 = vpack.c.bf16 %v975, %v974
  %v989 = vpack.c.bf16 %v977, %v976
  %v990 = vpack.c.bf16 %v979, %v978
  %v991 = vpack.c.bf16 %v981, %v980
  %v992 = vpack.c.bf16 %v983, %v982
  %v993 = vpack.c.bf16 %v985, %v984
  %v994 = vpack.c.bf16 %v987, %v986
  %s995 = scalar_lea.vmem %s3, 256
  %v996 = vld [vmem:[%s995] sm:$0xff]
  %v997 = vld [vmem:[%s995 + $0x8] sm:$0xff]
  %v998 = vld [vmem:[%s995 + $0x10] sm:$0xff]
  %v999 = vld [vmem:[%s995 + $0x18] sm:$0xff]
  %v1000 = vld [vmem:[%s995 + $0x20] sm:$0xff]
  %v1001 = vld [vmem:[%s995 + $0x28] sm:$0xff]
  %v1002 = vld [vmem:[%s995 + $0x30] sm:$0xff]
  %v1003 = vld [vmem:[%s995 + $0x38] sm:$0xff]
  %v1004 = vld [vmem:[%s995 + $0x40] sm:$0xff]
  %v1005 = vld [vmem:[%s995 + $0x48] sm:$0xff]
  %v1006 = vld [vmem:[%s995 + $0x50] sm:$0xff]
  %v1007 = vld [vmem:[%s995 + $0x58] sm:$0xff]
  %v1008 = vld [vmem:[%s995 + $0x60] sm:$0xff]
  %v1009 = vld [vmem:[%s995 + $0x68] sm:$0xff]
  %v1010 = vld [vmem:[%s995 + $0x70] sm:$0xff]
  %v1011 = vld [vmem:[%s995 + $0x78] sm:$0xff]
  %v1028 = vunpack.c.l.b16 %v996
  %v1029 = vunpack.c.h.b16 %v996
  %v1030 = vunpack.c.l.b16 %v997
  %v1031 = vunpack.c.h.b16 %v997
  %v1032 = vunpack.c.l.b16 %v998
  %v1033 = vunpack.c.h.b16 %v998
  %v1034 = vunpack.c.l.b16 %v999
  %v1035 = vunpack.c.h.b16 %v999
  %v1036 = vunpack.c.l.b16 %v1000
  %v1037 = vunpack.c.h.b16 %v1000
  %v1038 = vunpack.c.l.b16 %v1001
  %v1039 = vunpack.c.h.b16 %v1001
  %v1040 = vunpack.c.l.b16 %v1002
  %v1041 = vunpack.c.h.b16 %v1002
  %v1042 = vunpack.c.l.b16 %v1003
  %v1043 = vunpack.c.h.b16 %v1003
  %v1044 = vunpack.c.l.b16 %v1004
  %v1045 = vunpack.c.h.b16 %v1004
  %v1046 = vunpack.c.l.b16 %v1005
  %v1047 = vunpack.c.h.b16 %v1005
  %v1048 = vunpack.c.l.b16 %v1006
  %v1049 = vunpack.c.h.b16 %v1006
  %v1050 = vunpack.c.l.b16 %v1007
  %v1051 = vunpack.c.h.b16 %v1007
  %v1052 = vunpack.c.l.b16 %v1008
  %v1053 = vunpack.c.h.b16 %v1008
  %v1054 = vunpack.c.l.b16 %v1009
  %v1055 = vunpack.c.h.b16 %v1009
  %v1056 = vunpack.c.l.b16 %v1010
  %v1057 = vunpack.c.h.b16 %v1010
  %v1058 = vunpack.c.l.b16 %v1011
  %v1059 = vunpack.c.h.b16 %v1011
  %v1060 = vpack.c.b16 %v1030, %v1028
  %v1061 = vpack.c.b16 %v1031, %v1029
  %v1062 = vpack.c.b16 %v1034, %v1032
  %v1063 = vpack.c.b16 %v1035, %v1033
  %v1064 = vpack.c.b16 %v1038, %v1036
  %v1065 = vpack.c.b16 %v1039, %v1037
  %v1066 = vpack.c.b16 %v1042, %v1040
  %v1067 = vpack.c.b16 %v1043, %v1041
  %v1068 = vpack.c.b16 %v1046, %v1044
  %v1069 = vpack.c.b16 %v1047, %v1045
  %v1070 = vpack.c.b16 %v1050, %v1048
  %v1071 = vpack.c.b16 %v1051, %v1049
  %v1072 = vpack.c.b16 %v1054, %v1052
  %v1073 = vpack.c.b16 %v1055, %v1053
  %v1074 = vpack.c.b16 %v1058, %v1056
  %v1075 = vpack.c.b16 %v1059, %v1057
  %1092 = vmatprep.subr.bf16.mxu0 %v1061
  %1093 = vmatpush1.bf16.msra.mxu0 %v1060
  %1094 = vmatprep.subr.bf16.mxu0 %v1063
  %1095 = vmatpush1.bf16.msra.mxu0 %v1062
  %1096 = vmatprep.subr.bf16.mxu0 %v1065
  %1097 = vmatpush1.bf16.msra.mxu0 %v1064
  %1098 = vmatprep.subr.bf16.mxu0 %v1067
  %1099 = vmatpush1.bf16.msra.mxu0 %v1066
  %1100 = vmatprep.subr.bf16.mxu0 %v1069
  %1101 = vmatpush1.bf16.msra.mxu0 %v1068
  %1102 = vmatprep.subr.bf16.mxu0 %v1071
  %1103 = vmatpush1.bf16.msra.mxu0 %v1070
  %1104 = vmatprep.subr.bf16.mxu0 %v1073
  %1105 = vmatpush1.bf16.msra.mxu0 %v1072
  %1106 = vmatprep.subr.bf16.mxu0 %v1075
  %1107 = vmatpush1.bf16.msra.mxu0 %v1074
  %1108 = vmatprep.subr.bf16.mxu0 0
  %1109 = vmatpush1.bf16.msra.mxu0 0
  %1110 = vmatprep.subr.bf16.mxu0 0
  %1111 = vmatpush1.bf16.msra.mxu0 0
  %1112 = vmatprep.subr.bf16.mxu0 0
  %1113 = vmatpush1.bf16.msra.mxu0 0
  %1114 = vmatprep.subr.bf16.mxu0 0
  %1115 = vmatpush1.bf16.msra.mxu0 0
  %1116 = vmatprep.subr.bf16.mxu0 0
  %1117 = vmatpush1.bf16.msra.mxu0 0
  %1118 = vmatprep.subr.bf16.mxu0 0
  %1119 = vmatpush1.bf16.msra.mxu0 0
  %1120 = vmatprep.subr.bf16.mxu0 0
  %1121 = vmatpush1.bf16.msra.mxu0 0
  %1122 = vmatprep.subr.bf16.mxu0 0
  %1123 = vmatpush1.bf16.msra.mxu0 0
  %1124 = vmatprep.mubr.bf16.mxu0 0
  %1125 = vmatmul.mubr.bf16.gmra.mrb[0].mxu0 %v988
  %v1126 = vpop.f32.mrb[0].mxu0
  %v1127 = vadd.f32 0.0, %v1126
  %v1128 = vpop.f32.mrb[0].mxu0
  %v1129 = vadd.f32 0.0, %v1128
  %v1130 = vpop.f32.mrb[0].mxu0
  %v1131 = vadd.f32 0.0, %v1130
  %v1132 = vpop.f32.mrb[0].mxu0
  %v1133 = vadd.f32 0.0, %v1132
  %1134 = vmatprep.mubr.bf16.mxu0 0
  %1135 = vmatmul.mubr.bf16.gmra.mrb[0].mxu0 %v989
  %v1136 = vpop.f32.mrb[0].mxu0
  %v1137 = vadd.f32 0.0, %v1136
  %v1138 = vpop.f32.mrb[0].mxu0
  %v1139 = vadd.f32 0.0, %v1138
  %v1140 = vpop.f32.mrb[0].mxu0
  %v1141 = vadd.f32 0.0, %v1140
  %v1142 = vpop.f32.mrb[0].mxu0
  %v1143 = vadd.f32 0.0, %v1142
  %1144 = vmatprep.mubr.bf16.mxu0 0
  %1145 = vmatmul.mubr.bf16.gmra.mrb[0].mxu0 %v990
  %v1146 = vpop.f32.mrb[0].mxu0
  %v1147 = vadd.f32 0.0, %v1146
  %v1148 = vpop.f32.mrb[0].mxu0
  %v1149 = vadd.f32 0.0, %v1148
  %v1150 = vpop.f32.mrb[0].mxu0
  %v1151 = vadd.f32 0.0, %v1150
  %v1152 = vpop.f32.mrb[0].mxu0
  %v1153 = vadd.f32 0.0, %v1152
  %1154 = vmatprep.mubr.bf16.mxu0 0
  %1155 = vmatmul.mubr.bf16.gmra.mrb[0].mxu0 %v991
  %v1156 = vpop.f32.mrb[0].mxu0
  %v1157 = vadd.f32 0.0, %v1156
  %v1158 = vpop.f32.mrb[0].mxu0
  %v1159 = vadd.f32 0.0, %v1158
  %v1160 = vpop.f32.mrb[0].mxu0
  %v1161 = vadd.f32 0.0, %v1160
  %v1162 = vpop.f32.mrb[0].mxu0
  %v1163 = vadd.f32 0.0, %v1162
  %1164 = vmatprep.mubr.bf16.mxu0 0
  %1165 = vmatmul.mubr.bf16.gmra.mrb[0].mxu0 %v992
  %v1166 = vpop.f32.mrb[0].mxu0
  %v1167 = vadd.f32 0.0, %v1166
  %v1168 = vpop.f32.mrb[0].mxu0
  %v1169 = vadd.f32 0.0, %v1168
  %v1170 = vpop.f32.mrb[0].mxu0
  %v1171 = vadd.f32 0.0, %v1170
  %v1172 = vpop.f32.mrb[0].mxu0
  %v1173 = vadd.f32 0.0, %v1172
  %1174 = vmatprep.mubr.bf16.mxu0 0
  %1175 = vmatmul.mubr.bf16.gmra.mrb[0].mxu0 %v993
  %v1176 = vpop.f32.mrb[0].mxu0
  %v1177 = vadd.f32 0.0, %v1176
  %v1178 = vpop.f32.mrb[0].mxu0
  %v1179 = vadd.f32 0.0, %v1178
  %v1180 = vpop.f32.mrb[0].mxu0
  %v1181 = vadd.f32 0.0, %v1180
  %v1182 = vpop.f32.mrb[0].mxu0
  %v1183 = vadd.f32 0.0, %v1182
  %1184 = vmatprep.mubr.bf16.mxu0 0
  %1185 = vmatmul.mubr.bf16.gmra.mrb[0].mxu0 %v994
  %v1186 = vpop.f32.mrb[0].mxu0
  %v1187 = vadd.f32 0.0, %v1186
  %v1188 = vpop.f32.mrb[0].mxu0
  %v1189 = vadd.f32 0.0, %v1188
  %v1190 = vpop.f32.mrb[0].mxu0
  %v1191 = vadd.f32 0.0, %v1190
  %v1192 = vpop.f32.mrb[0].mxu0
  %v1193 = vadd.f32 0.0, %v1192
  %1194 = vdwg.mxu0
  %v1195 = vadd.f32 %v906, %v1127
  %v1196 = vadd.f32 %v908, %v1129
  %v1197 = vadd.f32 %v910, %v1131
  %v1198 = vadd.f32 %v912, %v1133
  %v1199 = vadd.f32 %v916, %v1137
  %v1200 = vadd.f32 %v918, %v1139
  %v1201 = vadd.f32 %v920, %v1141
  %v1202 = vadd.f32 %v922, %v1143
  %v1203 = vadd.f32 %v926, %v1147
  %v1204 = vadd.f32 %v928, %v1149
  %v1205 = vadd.f32 %v930, %v1151
  %v1206 = vadd.f32 %v932, %v1153
  %v1207 = vadd.f32 %v936, %v1157
  %v1208 = vadd.f32 %v938, %v1159
  %v1209 = vadd.f32 %v940, %v1161
  %v1210 = vadd.f32 %v942, %v1163
  %v1211 = vadd.f32 %v946, %v1167
  %v1212 = vadd.f32 %v948, %v1169
  %v1213 = vadd.f32 %v950, %v1171
  %v1214 = vadd.f32 %v952, %v1173
  %v1215 = vadd.f32 %v956, %v1177
  %v1216 = vadd.f32 %v958, %v1179
  %v1217 = vadd.f32 %v960, %v1181
  %v1218 = vadd.f32 %v962, %v1183
  %v1219 = vadd.f32 %v966, %v1187
  %v1220 = vadd.f32 %v968, %v1189
  %v1221 = vadd.f32 %v970, %v1191
  %v1222 = vadd.f32 %v972, %v1193
  %v1223 = vld [vmem:[%s4] sm:$0x3]
  %v1225 = vlaneseq
  %v1226 = vshrl.u32 %v1225, 7
  %v1227 = vsub.s32 0, %v1226
  %v1228 = vrot.slane %v1223, %v1227
  %v1229 = vlaneseq
  %v1230 = vshrl.u32 %v1229, 7
  %v1231 = vsub.s32 1, %v1230
  %v1232 = vrot.slane %v1223, %v1231
  %v1235 = vadd.f32 %v1195, %v1228
  %v1236 = vadd.f32 %v1196, %v1232
  %v1237 = vadd.f32 %v1197, %v1228
  %v1238 = vadd.f32 %v1198, %v1232
  %v1239 = vadd.f32 %v1199, %v1228
  %v1240 = vadd.f32 %v1200, %v1232
  %v1241 = vadd.f32 %v1201, %v1228
  %v1242 = vadd.f32 %v1202, %v1232
  %v1243 = vadd.f32 %v1203, %v1228
  %v1244 = vadd.f32 %v1204, %v1232
  %v1245 = vadd.f32 %v1205, %v1228
  %v1246 = vadd.f32 %v1206, %v1232
  %v1247 = vadd.f32 %v1207, %v1228
  %v1248 = vadd.f32 %v1208, %v1232
  %v1249 = vadd.f32 %v1209, %v1228
  %v1250 = vadd.f32 %v1210, %v1232
  %v1251 = vadd.f32 %v1211, %v1228
  %v1252 = vadd.f32 %v1212, %v1232
  %v1253 = vadd.f32 %v1213, %v1228
  %v1254 = vadd.f32 %v1214, %v1232
  %v1255 = vadd.f32 %v1215, %v1228
  %v1256 = vadd.f32 %v1216, %v1232
  %v1257 = vadd.f32 %v1217, %v1228
  %v1258 = vadd.f32 %v1218, %v1232
  %v1259 = vadd.f32 %v1219, %v1228
  %v1260 = vadd.f32 %v1220, %v1232
  %v1261 = vadd.f32 %v1221, %v1228
  %v1262 = vadd.f32 %v1222, %v1232
  %v1263 = vmax.f32 %v1235, 0.0
  %v1264 = vmax.f32 %v1236, 0.0
  %v1265 = vmax.f32 %v1237, 0.0
  %v1266 = vmax.f32 %v1238, 0.0
  %v1267 = vmax.f32 %v1239, 0.0
  %v1268 = vmax.f32 %v1240, 0.0
  %v1269 = vmax.f32 %v1241, 0.0
  %v1270 = vmax.f32 %v1242, 0.0
  %v1271 = vmax.f32 %v1243, 0.0
  %v1272 = vmax.f32 %v1244, 0.0
  %v1273 = vmax.f32 %v1245, 0.0
  %v1274 = vmax.f32 %v1246, 0.0
  %v1275 = vmax.f32 %v1247, 0.0
  %v1276 = vmax.f32 %v1248, 0.0
  %v1277 = vmax.f32 %v1249, 0.0
  %v1278 = vmax.f32 %v1250, 0.0
  %v1279 = vmax.f32 %v1251, 0.0
  %v1280 = vmax.f32 %v1252, 0.0
  %v1281 = vmax.f32 %v1253, 0.0
  %v1282 = vmax.f32 %v1254, 0.0
  %v1283 = vmax.f32 %v1255, 0.0
  %v1284 = vmax.f32 %v1256, 0.0
  %v1285 = vmax.f32 %v1257, 0.0
  %v1286 = vmax.f32 %v1258, 0.0
  %v1287 = vmax.f32 %v1259, 0.0
  %v1288 = vmax.f32 %v1260, 0.0
  %v1289 = vmax.f32 %v1261, 0.0
  %v1290 = vmax.f32 %v1262, 0.0
  %v1291 = vmax.f32 %v1263, %v1264
  %v1292 = vmax.f32 %v1265, %v1266
  %v1293 = vmax.f32 %v1267, %v1268
  %v1294 = vmax.f32 %v1269, %v1270
  %v1295 = vmax.f32 %v1271, %v1272
  %v1296 = vmax.f32 %v1273, %v1274
  %v1297 = vmax.f32 %v1275, %v1276
  %v1298 = vmax.f32 %v1277, %v1278
  %v1299 = vmax.f32 %v1279, %v1280
  %v1300 = vmax.f32 %v1281, %v1282
  %v1301 = vmax.f32 %v1283, %v1284
  %v1302 = vmax.f32 %v1285, %v1286
  %v1303 = vmax.f32 %v1287, %v1288
  %v1304 = vmax.f32 %v1289, %v1290
  %v1305 = vmax.f32 %v1291, %v1292
  %1306 = vst [vmem:[#allocation3 + $0x8] sm:$0xff] %v1305
  %v1307 = vmax.f32 %v1293, %v1294
  %1308 = vst [vmem:[#allocation3 + $0x10] sm:$0xff] %v1307
  %v1309 = vmax.f32 %v1295, %v1296
  %1310 = vst [vmem:[#allocation3 + $0x18] sm:$0xff] %v1309
  %v1311 = vmax.f32 %v1297, %v1298
  %1312 = vst [vmem:[#allocation3 + $0x20] sm:$0xff] %v1311
  %v1313 = vmax.f32 %v1299, %v1300
  %1314 = vst [vmem:[#allocation3 + $0x28] sm:$0xff] %v1313
  %v1315 = vmax.f32 %v1301, %v1302
  %1316 = vst [vmem:[#allocation3 + $0x30] sm:$0xff] %v1315
  %v1317 = vmax.f32 %v1303, %v1304
  %1318 = vst [vmem:[#allocation3 + $0x38] sm:$0xff] %v1317
  %v1319 = vld [vmem:[#allocation3] sm:$0xff]
  %v1320 = vld [vmem:[#allocation3 + $0x8] sm:$0xff]
  %v1321 = vld [vmem:[#allocation3 + $0x10] sm:$0xff]
  %v1322 = vld [vmem:[#allocation3 + $0x18] sm:$0xff]
  %v1323 = vld [vmem:[#allocation3 + $0x20] sm:$0xff]
  %v1324 = vld [vmem:[#allocation3 + $0x28] sm:$0xff]
  %v1325 = vpack.c.bf16 %v1320, %v1319
  %v1326 = vpack.c.bf16 %v1322, %v1321
  %v1327 = vpack.c.bf16 %v1324, %v1323
  %v1328 = vld [vmem:[%s5] sm:$0xff]
  %v1329 = vld [vmem:[%s5 + $0x8] sm:$0xff]
  %v1330 = vld [vmem:[%s5 + $0x10] sm:$0xff]
  %v1331 = vld [vmem:[%s5 + $0x18] sm:$0xff]
  %v1332 = vld [vmem:[%s5 + $0x20] sm:$0xff]
  %v1333 = vld [vmem:[%s5 + $0x28] sm:$0xff]
  %v1334 = vld [vmem:[%s5 + $0x30] sm:$0xff]
  %v1335 = vld [vmem:[%s5 + $0x38] sm:$0xff]
  %v1336 = vld [vmem:[%s5 + $0x40] sm:$0xff]
  %v1337 = vld [vmem:[%s5 + $0x48] sm:$0xff]
  %v1338 = vld [vmem:[%s5 + $0x50] sm:$0xff]
  %v1339 = vld [vmem:[%s5 + $0x58] sm:$0xff]
  %v1340 = vld [vmem:[%s5 + $0x60] sm:$0xff]
  %v1341 = vld [vmem:[%s5 + $0x68] sm:$0xff]
  %v1342 = vld [vmem:[%s5 + $0x70] sm:$0xff]
  %v1343 = vld [vmem:[%s5 + $0x78] sm:$0xff]
  %v1344 = vld [vmem:[#allocation3 + $0x30] sm:$0xff]
  %v1345 = vpack.c.bf16 %v1321, %v1320
  %v1346 = vpack.c.bf16 %v1323, %v1322
  %v1347 = vpack.c.bf16 %v1344, %v1324
  %s1348 = scalar_lea.vmem %s5, 128
  %v1349 = vld [vmem:[%s1348] sm:$0xff]
  %v1350 = vld [vmem:[%s1348 + $0x8] sm:$0xff]
  %v1351 = vld [vmem:[%s1348 + $0x10] sm:$0xff]
  %v1352 = vld [vmem:[%s1348 + $0x18] sm:$0xff]
  %v1353 = vld [vmem:[%s1348 + $0x20] sm:$0xff]
  %v1354 = vld [vmem:[%s1348 + $0x28] sm:$0xff]
  %v1355 = vld [vmem:[%s1348 + $0x30] sm:$0xff]
  %v1356 = vld [vmem:[%s1348 + $0x38] sm:$0xff]
  %v1357 = vld [vmem:[%s1348 + $0x40] sm:$0xff]
  %v1358 = vld [vmem:[%s1348 + $0x48] sm:$0xff]
  %v1359 = vld [vmem:[%s1348 + $0x50] sm:$0xff]
  %v1360 = vld [vmem:[%s1348 + $0x58] sm:$0xff]
  %v1361 = vld [vmem:[%s1348 + $0x60] sm:$0xff]
  %v1362 = vld [vmem:[%s1348 + $0x68] sm:$0xff]
  %v1363 = vld [vmem:[%s1348 + $0x70] sm:$0xff]
  %v1364 = vld [vmem:[%s1348 + $0x78] sm:$0xff]
  %v1381 = vunpack.c.l.b16 %v1349
  %v1382 = vunpack.c.h.b16 %v1349
  %v1383 = vunpack.c.l.b16 %v1350
  %v1384 = vunpack.c.h.b16 %v1350
  %v1385 = vunpack.c.l.b16 %v1351
  %v1386 = vunpack.c.h.b16 %v1351
  %v1387 = vunpack.c.l.b16 %v1352
  %v1388 = vunpack.c.h.b16 %v1352
  %v1389 = vunpack.c.l.b16 %v1353
  %v1390 = vunpack.c.h.b16 %v1353
  %v1391 = vunpack.c.l.b16 %v1354
  %v1392 = vunpack.c.h.b16 %v1354
  %v1393 = vunpack.c.l.b16 %v1355
  %v1394 = vunpack.c.h.b16 %v1355
  %v1395 = vunpack.c.l.b16 %v1356
  %v1396 = vunpack.c.h.b16 %v1356
  %v1397 = vunpack.c.l.b16 %v1357
  %v1398 = vunpack.c.h.b16 %v1357
  %v1399 = vunpack.c.l.b16 %v1358
  %v1400 = vunpack.c.h.b16 %v1358
  %v1401 = vunpack.c.l.b16 %v1359
  %v1402 = vunpack.c.h.b16 %v1359
  %v1403 = vunpack.c.l.b16 %v1360
  %v1404 = vunpack.c.h.b16 %v1360
  %v1405 = vunpack.c.l.b16 %v1361
  %v1406 = vunpack.c.h.b16 %v1361
  %v1407 = vunpack.c.l.b16 %v1362
  %v1408 = vunpack.c.h.b16 %v1362
  %v1409 = vunpack.c.l.b16 %v1363
  %v1410 = vunpack.c.h.b16 %v1363
  %v1411 = vunpack.c.l.b16 %v1364
  %v1412 = vunpack.c.h.b16 %v1364
  %v1413 = vpack.c.b16 %v1383, %v1381
  %v1414 = vpack.c.b16 %v1384, %v1382
  %v1415 = vpack.c.b16 %v1387, %v1385
  %v1416 = vpack.c.b16 %v1388, %v1386
  %v1417 = vpack.c.b16 %v1391, %v1389
  %v1418 = vpack.c.b16 %v1392, %v1390
  %v1419 = vpack.c.b16 %v1395, %v1393
  %v1420 = vpack.c.b16 %v1396, %v1394
  %v1421 = vpack.c.b16 %v1399, %v1397
  %v1422 = vpack.c.b16 %v1400, %v1398
  %v1423 = vpack.c.b16 %v1403, %v1401
  %v1424 = vpack.c.b16 %v1404, %v1402
  %v1425 = vpack.c.b16 %v1407, %v1405
  %v1426 = vpack.c.b16 %v1408, %v1406
  %v1427 = vpack.c.b16 %v1411, %v1409
  %v1428 = vpack.c.b16 %v1412, %v1410
  %1445 = vmatprep.subr.bf16.mxu0 %v1414
  %1446 = vmatpush1.bf16.msra.mxu0 %v1413
  %1447 = vmatprep.subr.bf16.mxu0 %v1416
  %1448 = vmatpush1.bf16.msra.mxu0 %v1415
  %1449 = vmatprep.subr.bf16.mxu0 %v1418
  %1450 = vmatpush1.bf16.msra.mxu0 %v1417
  %1451 = vmatprep.subr.bf16.mxu0 %v1420
  %1452 = vmatpush1.bf16.msra.mxu0 %v1419
  %1453 = vmatprep.subr.bf16.mxu0 %v1422
  %1454 = vmatpush1.bf16.msra.mxu0 %v1421
  %1455 = vmatprep.subr.bf16.mxu0 %v1424
  %1456 = vmatpush1.bf16.msra.mxu0 %v1423
  %1457 = vmatprep.subr.bf16.mxu0 %v1426
  %1458 = vmatpush1.bf16.msra.mxu0 %v1425
  %1459 = vmatprep.subr.bf16.mxu0 %v1428
  %1460 = vmatpush1.bf16.msra.mxu0 %v1427
  %1461 = vmatprep.subr.bf16.mxu0 0
  %1462 = vmatpush1.bf16.msra.mxu0 0
  %1463 = vmatprep.subr.bf16.mxu0 0
  %1464 = vmatpush1.bf16.msra.mxu0 0
  %1465 = vmatprep.subr.bf16.mxu0 0
  %1466 = vmatpush1.bf16.msra.mxu0 0
  %1467 = vmatprep.subr.bf16.mxu0 0
  %1468 = vmatpush1.bf16.msra.mxu0 0
  %1469 = vmatprep.subr.bf16.mxu0 0
  %1470 = vmatpush1.bf16.msra.mxu0 0
  %1471 = vmatprep.subr.bf16.mxu0 0
  %1472 = vmatpush1.bf16.msra.mxu0 0
  %1473 = vmatprep.subr.bf16.mxu0 0
  %1474 = vmatpush1.bf16.msra.mxu0 0
  %1475 = vmatprep.subr.bf16.mxu0 0
  %1476 = vmatpush1.bf16.msra.mxu0 0
  %1477 = vmatprep.mubr.bf16.mxu0 0
  %1478 = vmatmul.mubr.bf16.gmra.mrb[0].mxu0 %v1345
  %v1479 = vpop.f32.mrb[0].mxu0
  %v1480 = vadd.f32 0.0, %v1479
  %v1481 = vpop.f32.mrb[0].mxu0
  %v1482 = vadd.f32 0.0, %v1481
  %v1483 = vpop.f32.mrb[0].mxu0
  %v1484 = vadd.f32 0.0, %v1483
  %v1485 = vpop.f32.mrb[0].mxu0
  %v1486 = vadd.f32 0.0, %v1485
  %1487 = vmatprep.mubr.bf16.mxu0 0
  %1488 = vmatmul.mubr.bf16.gmra.mrb[0].mxu0 %v1346
  %v1489 = vpop.f32.mrb[0].mxu0
  %v1490 = vadd.f32 0.0, %v1489
  %v1491 = vpop.f32.mrb[0].mxu0
  %v1492 = vadd.f32 0.0, %v1491
  %v1493 = vpop.f32.mrb[0].mxu0
  %v1494 = vadd.f32 0.0, %v1493
  %v1495 = vpop.f32.mrb[0].mxu0
  %v1496 = vadd.f32 0.0, %v1495
  %1497 = vmatprep.mubr.bf16.mxu0 0
  %1498 = vmatmul.mubr.bf16.gmra.mrb[0].mxu0 %v1347
  %v1499 = vpop.f32.mrb[0].mxu0
  %v1500 = vadd.f32 0.0, %v1499
  %v1501 = vpop.f32.mrb[0].mxu0
  %v1502 = vadd.f32 0.0, %v1501
  %v1503 = vpop.f32.mrb[0].mxu0
  %v1504 = vadd.f32 0.0, %v1503
  %v1505 = vpop.f32.mrb[0].mxu0
  %v1506 = vadd.f32 0.0, %v1505
  %1507 = vdwg.mxu0
  %v1524 = vunpack.c.l.b16 %v1328
  %v1525 = vunpack.c.h.b16 %v1328
  %v1526 = vunpack.c.l.b16 %v1329
  %v1527 = vunpack.c.h.b16 %v1329
  %v1528 = vunpack.c.l.b16 %v1330
  %v1529 = vunpack.c.h.b16 %v1330
  %v1530 = vunpack.c.l.b16 %v1331
  %v1531 = vunpack.c.h.b16 %v1331
  %v1532 = vunpack.c.l.b16 %v1332
  %v1533 = vunpack.c.h.b16 %v1332
  %v1534 = vunpack.c.l.b16 %v1333
  %v1535 = vunpack.c.h.b16 %v1333
  %v1536 = vunpack.c.l.b16 %v1334
  %v1537 = vunpack.c.h.b16 %v1334
  %v1538 = vunpack.c.l.b16 %v1335
  %v1539 = vunpack.c.h.b16 %v1335
  %v1540 = vunpack.c.l.b16 %v1336
  %v1541 = vunpack.c.h.b16 %v1336
  %v1542 = vunpack.c.l.b16 %v1337
  %v1543 = vunpack.c.h.b16 %v1337
  %v1544 = vunpack.c.l.b16 %v1338
  %v1545 = vunpack.c.h.b16 %v1338
  %v1546 = vunpack.c.l.b16 %v1339
  %v1547 = vunpack.c.h.b16 %v1339
  %v1548 = vunpack.c.l.b16 %v1340
  %v1549 = vunpack.c.h.b16 %v1340
  %v1550 = vunpack.c.l.b16 %v1341
  %v1551 = vunpack.c.h.b16 %v1341
  %v1552 = vunpack.c.l.b16 %v1342
  %v1553 = vunpack.c.h.b16 %v1342
  %v1554 = vunpack.c.l.b16 %v1343
  %v1555 = vunpack.c.h.b16 %v1343
  %v1556 = vpack.c.b16 %v1526, %v1524
  %v1557 = vpack.c.b16 %v1527, %v1525
  %v1558 = vpack.c.b16 %v1530, %v1528
  %v1559 = vpack.c.b16 %v1531, %v1529
  %v1560 = vpack.c.b16 %v1534, %v1532
  %v1561 = vpack.c.b16 %v1535, %v1533
  %v1562 = vpack.c.b16 %v1538, %v1536
  %v1563 = vpack.c.b16 %v1539, %v1537
  %v1564 = vpack.c.b16 %v1542, %v1540
  %v1565 = vpack.c.b16 %v1543, %v1541
  %v1566 = vpack.c.b16 %v1546, %v1544
  %v1567 = vpack.c.b16 %v1547, %v1545
  %v1568 = vpack.c.b16 %v1550, %v1548
  %v1569 = vpack.c.b16 %v1551, %v1549
  %v1570 = vpack.c.b16 %v1554, %v1552
  %v1571 = vpack.c.b16 %v1555, %v1553
  %1588 = vmatprep.subr.bf16.mxu0 %v1557
  %1589 = vmatpush1.bf16.msra.mxu0 %v1556
  %1590 = vmatprep.subr.bf16.mxu0 %v1559
  %1591 = vmatpush1.bf16.msra.mxu0 %v1558
  %1592 = vmatprep.subr.bf16.mxu0 %v1561
  %1593 = vmatpush1.bf16.msra.mxu0 %v1560
  %1594 = vmatprep.subr.bf16.mxu0 %v1563
  %1595 = vmatpush1.bf16.msra.mxu0 %v1562
  %1596 = vmatprep.subr.bf16.mxu0 %v1565
  %1597 = vmatpush1.bf16.msra.mxu0 %v1564
  %1598 = vmatprep.subr.bf16.mxu0 %v1567
  %1599 = vmatpush1.bf16.msra.mxu0 %v1566
  %1600 = vmatprep.subr.bf16.mxu0 %v1569
  %1601 = vmatpush1.bf16.msra.mxu0 %v1568
  %1602 = vmatprep.subr.bf16.mxu0 %v1571
  %1603 = vmatpush1.bf16.msra.mxu0 %v1570
  %1604 = vmatprep.subr.bf16.mxu0 0
  %1605 = vmatpush1.bf16.msra.mxu0 0
  %1606 = vmatprep.subr.bf16.mxu0 0
  %1607 = vmatpush1.bf16.msra.mxu0 0
  %1608 = vmatprep.subr.bf16.mxu0 0
  %1609 = vmatpush1.bf16.msra.mxu0 0
  %1610 = vmatprep.subr.bf16.mxu0 0
  %1611 = vmatpush1.bf16.msra.mxu0 0
  %1612 = vmatprep.subr.bf16.mxu0 0
  %1613 = vmatpush1.bf16.msra.mxu0 0
  %1614 = vmatprep.subr.bf16.mxu0 0
  %1615 = vmatpush1.bf16.msra.mxu0 0
  %1616 = vmatprep.subr.bf16.mxu0 0
  %1617 = vmatpush1.bf16.msra.mxu0 0
  %1618 = vmatprep.subr.bf16.mxu0 0
  %1619 = vmatpush1.bf16.msra.mxu0 0
  %1620 = vmatprep.mubr.bf16.mxu0 0
  %1621 = vmatmul.mubr.bf16.gmra.mrb[0].mxu0 %v1325
  %v1622 = vpop.f32.mrb[0].mxu0
  %v1623 = vadd.f32 %v1480, %v1622
  %v1624 = vpop.f32.mrb[0].mxu0
  %v1625 = vadd.f32 %v1482, %v1624
  %v1626 = vpop.f32.mrb[0].mxu0
  %v1627 = vadd.f32 %v1484, %v1626
  %v1628 = vpop.f32.mrb[0].mxu0
  %v1629 = vadd.f32 %v1486, %v1628
  %1630 = vmatprep.mubr.bf16.mxu0 0
  %1631 = vmatmul.mubr.bf16.gmra.mrb[0].mxu0 %v1326
  %v1632 = vpop.f32.mrb[0].mxu0
  %v1633 = vadd.f32 %v1490, %v1632
  %v1634 = vpop.f32.mrb[0].mxu0
  %v1635 = vadd.f32 %v1492, %v1634
  %v1636 = vpop.f32.mrb[0].mxu0
  %v1637 = vadd.f32 %v1494, %v1636
  %v1638 = vpop.f32.mrb[0].mxu0
  %v1639 = vadd.f32 %v1496, %v1638
  %1640 = vmatprep.mubr.bf16.mxu0 0
  %1641 = vmatmul.mubr.bf16.gmra.mrb[0].mxu0 %v1327
  %v1642 = vpop.f32.mrb[0].mxu0
  %v1643 = vadd.f32 %v1500, %v1642
  %v1644 = vpop.f32.mrb[0].mxu0
  %v1645 = vadd.f32 %v1502, %v1644
  %v1646 = vpop.f32.mrb[0].mxu0
  %v1647 = vadd.f32 %v1504, %v1646
  %v1648 = vpop.f32.mrb[0].mxu0
  %v1649 = vadd.f32 %v1506, %v1648
  %1650 = vdwg.mxu0
  %v1651 = vld [vmem:[#allocation3 + $0x10] sm:$0xff]
  %v1652 = vld [vmem:[#allocation3 + $0x18] sm:$0xff]
  %v1653 = vld [vmem:[#allocation3 + $0x20] sm:$0xff]
  %v1654 = vld [vmem:[#allocation3 + $0x28] sm:$0xff]
  %v1655 = vld [vmem:[#allocation3 + $0x30] sm:$0xff]
  %v1656 = vld [vmem:[#allocation3 + $0x38] sm:$0xff]
  %v1657 = vpack.c.bf16 %v1652, %v1651
  %v1658 = vpack.c.bf16 %v1654, %v1653
  %v1659 = vpack.c.bf16 %v1656, %v1655
  %s1660 = scalar_lea.vmem %s5, 256
  %v1661 = vld [vmem:[%s1660] sm:$0xff]
  %v1662 = vld [vmem:[%s1660 + $0x8] sm:$0xff]
  %v1663 = vld [vmem:[%s1660 + $0x10] sm:$0xff]
  %v1664 = vld [vmem:[%s1660 + $0x18] sm:$0xff]
  %v1665 = vld [vmem:[%s1660 + $0x20] sm:$0xff]
  %v1666 = vld [vmem:[%s1660 + $0x28] sm:$0xff]
  %v1667 = vld [vmem:[%s1660 + $0x30] sm:$0xff]
  %v1668 = vld [vmem:[%s1660 + $0x38] sm:$0xff]
  %v1669 = vld [vmem:[%s1660 + $0x40] sm:$0xff]
  %v1670 = vld [vmem:[%s1660 + $0x48] sm:$0xff]
  %v1671 = vld [vmem:[%s1660 + $0x50] sm:$0xff]
  %v1672 = vld [vmem:[%s1660 + $0x58] sm:$0xff]
  %v1673 = vld [vmem:[%s1660 + $0x60] sm:$0xff]
  %v1674 = vld [vmem:[%s1660 + $0x68] sm:$0xff]
  %v1675 = vld [vmem:[%s1660 + $0x70] sm:$0xff]
  %v1676 = vld [vmem:[%s1660 + $0x78] sm:$0xff]
  %v1693 = vunpack.c.l.b16 %v1661
  %v1694 = vunpack.c.h.b16 %v1661
  %v1695 = vunpack.c.l.b16 %v1662
  %v1696 = vunpack.c.h.b16 %v1662
  %v1697 = vunpack.c.l.b16 %v1663
  %v1698 = vunpack.c.h.b16 %v1663
  %v1699 = vunpack.c.l.b16 %v1664
  %v1700 = vunpack.c.h.b16 %v1664
  %v1701 = vunpack.c.l.b16 %v1665
  %v1702 = vunpack.c.h.b16 %v1665
  %v1703 = vunpack.c.l.b16 %v1666
  %v1704 = vunpack.c.h.b16 %v1666
  %v1705 = vunpack.c.l.b16 %v1667
  %v1706 = vunpack.c.h.b16 %v1667
  %v1707 = vunpack.c.l.b16 %v1668
  %v1708 = vunpack.c.h.b16 %v1668
  %v1709 = vunpack.c.l.b16 %v1669
  %v1710 = vunpack.c.h.b16 %v1669
  %v1711 = vunpack.c.l.b16 %v1670
  %v1712 = vunpack.c.h.b16 %v1670
  %v1713 = vunpack.c.l.b16 %v1671
  %v1714 = vunpack.c.h.b16 %v1671
  %v1715 = vunpack.c.l.b16 %v1672
  %v1716 = vunpack.c.h.b16 %v1672
  %v1717 = vunpack.c.l.b16 %v1673
  %v1718 = vunpack.c.h.b16 %v1673
  %v1719 = vunpack.c.l.b16 %v1674
  %v1720 = vunpack.c.h.b16 %v1674
  %v1721 = vunpack.c.l.b16 %v1675
  %v1722 = vunpack.c.h.b16 %v1675
  %v1723 = vunpack.c.l.b16 %v1676
  %v1724 = vunpack.c.h.b16 %v1676
  %v1725 = vpack.c.b16 %v1695, %v1693
  %v1726 = vpack.c.b16 %v1696, %v1694
  %v1727 = vpack.c.b16 %v1699, %v1697
  %v1728 = vpack.c.b16 %v1700, %v1698
  %v1729 = vpack.c.b16 %v1703, %v1701
  %v1730 = vpack.c.b16 %v1704, %v1702
  %v1731 = vpack.c.b16 %v1707, %v1705
  %v1732 = vpack.c.b16 %v1708, %v1706
  %v1733 = vpack.c.b16 %v1711, %v1709
  %v1734 = vpack.c.b16 %v1712, %v1710
  %v1735 = vpack.c.b16 %v1715, %v1713
  %v1736 = vpack.c.b16 %v1716, %v1714
  %v1737 = vpack.c.b16 %v1719, %v1717
  %v1738 = vpack.c.b16 %v1720, %v1718
  %v1739 = vpack.c.b16 %v1723, %v1721
  %v1740 = vpack.c.b16 %v1724, %v1722
  %1757 = vmatprep.subr.bf16.mxu0 %v1726
  %1758 = vmatpush1.bf16.msra.mxu0 %v1725
  %1759 = vmatprep.subr.bf16.mxu0 %v1728
  %1760 = vmatpush1.bf16.msra.mxu0 %v1727
  %1761 = vmatprep.subr.bf16.mxu0 %v1730
  %1762 = vmatpush1.bf16.msra.mxu0 %v1729
  %1763 = vmatprep.subr.bf16.mxu0 %v1732
  %1764 = vmatpush1.bf16.msra.mxu0 %v1731
  %1765 = vmatprep.subr.bf16.mxu0 %v1734
  %1766 = vmatpush1.bf16.msra.mxu0 %v1733
  %1767 = vmatprep.subr.bf16.mxu0 %v1736
  %1768 = vmatpush1.bf16.msra.mxu0 %v1735
  %1769 = vmatprep.subr.bf16.mxu0 %v1738
  %1770 = vmatpush1.bf16.msra.mxu0 %v1737
  %1771 = vmatprep.subr.bf16.mxu0 %v1740
  %1772 = vmatpush1.bf16.msra.mxu0 %v1739
  %1773 = vmatprep.subr.bf16.mxu0 0
  %1774 = vmatpush1.bf16.msra.mxu0 0
  %1775 = vmatprep.subr.bf16.mxu0 0
  %1776 = vmatpush1.bf16.msra.mxu0 0
  %1777 = vmatprep.subr.bf16.mxu0 0
  %1778 = vmatpush1.bf16.msra.mxu0 0
  %1779 = vmatprep.subr.bf16.mxu0 0
  %1780 = vmatpush1.bf16.msra.mxu0 0
  %1781 = vmatprep.subr.bf16.mxu0 0
  %1782 = vmatpush1.bf16.msra.mxu0 0
  %1783 = vmatprep.subr.bf16.mxu0 0
  %1784 = vmatpush1.bf16.msra.mxu0 0
  %1785 = vmatprep.subr.bf16.mxu0 0
  %1786 = vmatpush1.bf16.msra.mxu0 0
  %1787 = vmatprep.subr.bf16.mxu0 0
  %1788 = vmatpush1.bf16.msra.mxu0 0
  %1789 = vmatprep.mubr.bf16.mxu0 0
  %1790 = vmatmul.mubr.bf16.gmra.mrb[0].mxu0 %v1657
  %v1791 = vpop.f32.mrb[0].mxu0
  %v1792 = vadd.f32 0.0, %v1791
  %v1793 = vpop.f32.mrb[0].mxu0
  %v1794 = vadd.f32 0.0, %v1793
  %v1795 = vpop.f32.mrb[0].mxu0
  %v1796 = vadd.f32 0.0, %v1795
  %v1797 = vpop.f32.mrb[0].mxu0
  %v1798 = vadd.f32 0.0, %v1797
  %1799 = vmatprep.mubr.bf16.mxu0 0
  %1800 = vmatmul.mubr.bf16.gmra.mrb[0].mxu0 %v1658
  %v1801 = vpop.f32.mrb[0].mxu0
  %v1802 = vadd.f32 0.0, %v1801
  %v1803 = vpop.f32.mrb[0].mxu0
  %v1804 = vadd.f32 0.0, %v1803
  %v1805 = vpop.f32.mrb[0].mxu0
  %v1806 = vadd.f32 0.0, %v1805
  %v1807 = vpop.f32.mrb[0].mxu0
  %v1808 = vadd.f32 0.0, %v1807
  %1809 = vmatprep.mubr.bf16.mxu0 0
  %1810 = vmatmul.mubr.bf16.gmra.mrb[0].mxu0 %v1659
  %v1811 = vpop.f32.mrb[0].mxu0
  %v1812 = vadd.f32 0.0, %v1811
  %v1813 = vpop.f32.mrb[0].mxu0
  %v1814 = vadd.f32 0.0, %v1813
  %v1815 = vpop.f32.mrb[0].mxu0
  %v1816 = vadd.f32 0.0, %v1815
  %v1817 = vpop.f32.mrb[0].mxu0
  %v1818 = vadd.f32 0.0, %v1817
  %1819 = vdwg.mxu0
  %v1820 = vadd.f32 %v1623, %v1792
  %v1821 = vadd.f32 %v1625, %v1794
  %v1822 = vadd.f32 %v1627, %v1796
  %v1823 = vadd.f32 %v1629, %v1798
  %v1824 = vadd.f32 %v1633, %v1802
  %v1825 = vadd.f32 %v1635, %v1804
  %v1826 = vadd.f32 %v1637, %v1806
  %v1827 = vadd.f32 %v1639, %v1808
  %v1828 = vadd.f32 %v1643, %v1812
  %v1829 = vadd.f32 %v1645, %v1814
  %v1830 = vadd.f32 %v1647, %v1816
  %v1831 = vadd.f32 %v1649, %v1818
  %v1832 = vld [vmem:[%s6] sm:$0x3]
  %v1834 = vlaneseq
  %v1835 = vshrl.u32 %v1834, 7
  %v1836 = vsub.s32 0, %v1835
  %v1837 = vrot.slane %v1832, %v1836
  %v1838 = vlaneseq
  %v1839 = vshrl.u32 %v1838, 7
  %v1840 = vsub.s32 1, %v1839
  %v1841 = vrot.slane %v1832, %v1840
  %v1844 = vadd.f32 %v1820, %v1837
  %v1845 = vadd.f32 %v1821, %v1841
  %v1846 = vadd.f32 %v1822, %v1837
  %v1847 = vadd.f32 %v1823, %v1841
  %v1848 = vadd.f32 %v1824, %v1837
  %v1849 = vadd.f32 %v1825, %v1841
  %v1850 = vadd.f32 %v1826, %v1837
  %v1851 = vadd.f32 %v1827, %v1841
  %v1852 = vadd.f32 %v1828, %v1837
  %v1853 = vadd.f32 %v1829, %v1841
  %v1854 = vadd.f32 %v1830, %v1837
  %v1855 = vadd.f32 %v1831, %v1841
  %v1856 = vmax.f32 %v1844, 0.0
  %v1857 = vmax.f32 %v1845, 0.0
  %v1858 = vmax.f32 %v1846, 0.0
  %v1859 = vmax.f32 %v1847, 0.0
  %v1860 = vmax.f32 %v1848, 0.0
  %v1861 = vmax.f32 %v1849, 0.0
  %v1862 = vmax.f32 %v1850, 0.0
  %v1863 = vmax.f32 %v1851, 0.0
  %v1864 = vmax.f32 %v1852, 0.0
  %v1865 = vmax.f32 %v1853, 0.0
  %v1866 = vmax.f32 %v1854, 0.0
  %v1867 = vmax.f32 %v1855, 0.0
  %v1868 = vmax.f32 %v1856, %v1857
  %v1869 = vmax.f32 %v1858, %v1859
  %v1870 = vmax.f32 %v1860, %v1861
  %v1871 = vmax.f32 %v1862, %v1863
  %v1872 = vmax.f32 %v1864, %v1865
  %v1873 = vmax.f32 %v1866, %v1867
  %v1874 = vmax.f32 %v1868, %v1869
  %v1875 = vmax.f32 %v1870, %v1871
  %v1876 = vmax.f32 %v1872, %v1873
  %v1877 = vpack.c.bf16 %v1874, %v1874
  %v1878 = vpack.c.bf16 %v1875, %v1875
  %v1879 = vpack.c.bf16 %v1876, %v1876
  %v1880 = vld [vmem:[%s7] sm:$0xf]
  %v1881 = vld [vmem:[%s7 + $0x4] sm:$0xf]
  %v1882 = vld [vmem:[%s7 + $0x8] sm:$0xf]
  %v1883 = vld [vmem:[%s7 + $0xc] sm:$0xf]
  %v1884 = vld [vmem:[%s7 + $0x10] sm:$0xf]
  %v1885 = vld [vmem:[%s7 + $0x14] sm:$0xf]
  %v1886 = vld [vmem:[%s7 + $0x18] sm:$0xf]
  %v1887 = vld [vmem:[%s7 + $0x1c] sm:$0xf]
  %v1888 = vld [vmem:[%s7 + $0x20] sm:$0xf]
  %v1889 = vld [vmem:[%s7 + $0x24] sm:$0xf]
  %v1890 = vld [vmem:[%s7 + $0x28] sm:$0xf]
  %v1891 = vld [vmem:[%s7 + $0x2c] sm:$0xf]
  %v1892 = vld [vmem:[%s7 + $0x30] sm:$0xf]
  %v1893 = vld [vmem:[%s7 + $0x34] sm:$0xf]
  %v1894 = vld [vmem:[%s7 + $0x38] sm:$0xf]
  %v1895 = vld [vmem:[%s7 + $0x3c] sm:$0xf]
  %v1896 = vld [vmem:[%s7 + $0x40] sm:$0xf]
  %v1897 = vld [vmem:[%s7 + $0x44] sm:$0xf]
  %v1898 = vld [vmem:[%s7 + $0x48] sm:$0xf]
  %v1899 = vld [vmem:[%s7 + $0x4c] sm:$0xf]
  %v1900 = vld [vmem:[%s7 + $0x50] sm:$0xf]
  %v1901 = vld [vmem:[%s7 + $0x54] sm:$0xf]
  %v1902 = vld [vmem:[%s7 + $0x58] sm:$0xf]
  %v1903 = vld [vmem:[%s7 + $0x5c] sm:$0xf]
  %v1904 = vld [vmem:[%s7 + $0x60] sm:$0xf]
  %v1905 = vld [vmem:[%s7 + $0x64] sm:$0xf]
  %v1906 = vld [vmem:[%s7 + $0x68] sm:$0xf]
  %v1907 = vld [vmem:[%s7 + $0x6c] sm:$0xf]
  %v1908 = vld [vmem:[%s7 + $0x70] sm:$0xf]
  %v1909 = vld [vmem:[%s7 + $0x74] sm:$0xf]
  %v1910 = vld [vmem:[%s7 + $0x78] sm:$0xf]
  %v1911 = vld [vmem:[%s7 + $0x7c] sm:$0xf]
  %v1912 = vld [vmem:[%s7 + $0x80] sm:$0xf]
  %v1913 = vld [vmem:[%s7 + $0x84] sm:$0xf]
  %v1914 = vld [vmem:[%s7 + $0x88] sm:$0xf]
  %v1915 = vld [vmem:[%s7 + $0x8c] sm:$0xf]
  %v1916 = vld [vmem:[%s7 + $0x90] sm:$0xf]
  %v1917 = vld [vmem:[%s7 + $0x94] sm:$0xf]
  %v1918 = vld [vmem:[%s7 + $0x98] sm:$0xf]
  %v1919 = vld [vmem:[%s7 + $0x9c] sm:$0xf]
  %v1920 = vld [vmem:[%s7 + $0xa0] sm:$0xf]
  %v1921 = vld [vmem:[%s7 + $0xa4] sm:$0xf]
  %v1922 = vld [vmem:[%s7 + $0xa8] sm:$0xf]
  %v1923 = vld [vmem:[%s7 + $0xac] sm:$0xf]
  %v1924 = vld [vmem:[%s7 + $0xb0] sm:$0xf]
  %v1925 = vld [vmem:[%s7 + $0xb4] sm:$0xf]
  %v1926 = vld [vmem:[%s7 + $0xb8] sm:$0xf]
  %v1927 = vld [vmem:[%s7 + $0xbc] sm:$0xf]
  %v1928 = vld [vmem:[%s8] sm:$0x1]
  %v1930 = vlaneseq
  %v1931 = vshrl.u32 %v1930, 7
  %v1932 = vsub.s32 0, %v1931
  %v1933 = vrot.slane %v1928, %v1932
  %v1983 = vunpack.c.l.b16 %v1880
  %v1984 = vunpack.c.l.b16 %v1881
  %v1985 = vunpack.c.l.b16 %v1882
  %v1986 = vunpack.c.l.b16 %v1883
  %v1987 = vunpack.c.l.b16 %v1884
  %v1988 = vunpack.c.l.b16 %v1885
  %v1989 = vunpack.c.l.b16 %v1886
  %v1990 = vunpack.c.l.b16 %v1887
  %v1991 = vunpack.c.l.b16 %v1888
  %v1992 = vunpack.c.l.b16 %v1889
  %v1993 = vunpack.c.l.b16 %v1890
  %v1994 = vunpack.c.l.b16 %v1891
  %v1995 = vunpack.c.l.b16 %v1892
  %v1996 = vunpack.c.l.b16 %v1893
  %v1997 = vunpack.c.l.b16 %v1894
  %v1998 = vunpack.c.l.b16 %v1895
  %v1999 = vunpack.c.l.b16 %v1896
  %v2000 = vunpack.c.l.b16 %v1897
  %v2001 = vunpack.c.l.b16 %v1898
  %v2002 = vunpack.c.l.b16 %v1899
  %v2003 = vunpack.c.l.b16 %v1900
  %v2004 = vunpack.c.l.b16 %v1901
  %v2005 = vunpack.c.l.b16 %v1902
  %v2006 = vunpack.c.l.b16 %v1903
  %v2007 = vunpack.c.l.b16 %v1904
  %v2008 = vunpack.c.l.b16 %v1905
  %v2009 = vunpack.c.l.b16 %v1906
  %v2010 = vunpack.c.l.b16 %v1907
  %v2011 = vunpack.c.l.b16 %v1908
  %v2012 = vunpack.c.l.b16 %v1909
  %v2013 = vunpack.c.l.b16 %v1910
  %v2014 = vunpack.c.l.b16 %v1911
  %v2015 = vunpack.c.l.b16 %v1912
  %v2016 = vunpack.c.l.b16 %v1913
  %v2017 = vunpack.c.l.b16 %v1914
  %v2018 = vunpack.c.l.b16 %v1915
  %v2019 = vunpack.c.l.b16 %v1916
  %v2020 = vunpack.c.l.b16 %v1917
  %v2021 = vunpack.c.l.b16 %v1918
  %v2022 = vunpack.c.l.b16 %v1919
  %v2023 = vunpack.c.l.b16 %v1920
  %v2024 = vunpack.c.l.b16 %v1921
  %v2025 = vunpack.c.l.b16 %v1922
  %v2026 = vunpack.c.l.b16 %v1923
  %v2027 = vunpack.c.l.b16 %v1924
  %v2028 = vunpack.c.l.b16 %v1925
  %v2029 = vunpack.c.l.b16 %v1926
  %v2030 = vunpack.c.l.b16 %v1927
  %v2031 = vpack.c.b16 %v1984, %v1983
  %v2032 = vpack.c.b16 %v1986, %v1985
  %v2033 = vpack.c.b16 %v1988, %v1987
  %v2034 = vpack.c.b16 %v1990, %v1989
  %v2035 = vpack.c.b16 %v1992, %v1991
  %v2036 = vpack.c.b16 %v1994, %v1993
  %v2037 = vpack.c.b16 %v1996, %v1995
  %v2038 = vpack.c.b16 %v1998, %v1997
  %v2039 = vpack.c.b16 %v2000, %v1999
  %v2040 = vpack.c.b16 %v2002, %v2001
  %v2041 = vpack.c.b16 %v2004, %v2003
  %v2042 = vpack.c.b16 %v2006, %v2005
  %v2043 = vpack.c.b16 %v2008, %v2007
  %v2044 = vpack.c.b16 %v2010, %v2009
  %v2045 = vpack.c.b16 %v2012, %v2011
  %v2046 = vpack.c.b16 %v2014, %v2013
  %v2047 = vpack.c.b16 %v2016, %v2015
  %v2048 = vpack.c.b16 %v2018, %v2017
  %v2049 = vpack.c.b16 %v2020, %v2019
  %v2050 = vpack.c.b16 %v2022, %v2021
  %v2051 = vpack.c.b16 %v2024, %v2023
  %v2052 = vpack.c.b16 %v2026, %v2025
  %v2053 = vpack.c.b16 %v2028, %v2027
  %v2054 = vpack.c.b16 %v2030, %v2029
  %2079 = vmatprep.subr.bf16.mxu0 0
  %2080 = vmatpush1.bf16.msra.mxu0 %v2031
  %2081 = vmatprep.subr.bf16.mxu0 0
  %2082 = vmatpush1.bf16.msra.mxu0 %v2032
  %2083 = vmatprep.subr.bf16.mxu0 0
  %2084 = vmatpush1.bf16.msra.mxu0 %v2033
  %2085 = vmatprep.subr.bf16.mxu0 0
  %2086 = vmatpush1.bf16.msra.mxu0 %v2034
  %2087 = vmatprep.subr.bf16.mxu0 0
  %2088 = vmatpush1.bf16.msra.mxu0 %v2035
  %2089 = vmatprep.subr.bf16.mxu0 0
  %2090 = vmatpush1.bf16.msra.mxu0 %v2036
  %2091 = vmatprep.subr.bf16.mxu0 0
  %2092 = vmatpush1.bf16.msra.mxu0 %v2037
  %2093 = vmatprep.subr.bf16.mxu0 0
  %2094 = vmatpush1.bf16.msra.mxu0 %v2038
  %2095 = vmatprep.subr.bf16.mxu0 0
  %2096 = vmatpush1.bf16.msra.mxu0 %v2039
  %2097 = vmatprep.subr.bf16.mxu0 0
  %2098 = vmatpush1.bf16.msra.mxu0 %v2040
  %2099 = vmatprep.subr.bf16.mxu0 0
  %2100 = vmatpush1.bf16.msra.mxu0 %v2041
  %2101 = vmatprep.subr.bf16.mxu0 0
  %2102 = vmatpush1.bf16.msra.mxu0 %v2042
  %2103 = vmatprep.subr.bf16.mxu0 0
  %2104 = vmatpush1.bf16.msra.mxu0 %v2043
  %2105 = vmatprep.subr.bf16.mxu0 0
  %2106 = vmatpush1.bf16.msra.mxu0 %v2044
  %2107 = vmatprep.subr.bf16.mxu0 0
  %2108 = vmatpush1.bf16.msra.mxu0 %v2045
  %2109 = vmatprep.subr.bf16.mxu0 0
  %2110 = vmatpush1.bf16.msra.mxu0 %v2046
  %2111 = vmatprep.mubr.bf16.mxu0 %v1878
  %2112 = vmatmul.mubr.bf16.gmra.mrb[0].mxu0 %v1877
  %v2113 = vpop.f32.mrb[0].mxu0
  %v2114 = vadd.f32 %v1933, %v2113
  %v2115 = vpop.f32.mrb[0].mxu0
  %v2116 = vpop.f32.mrb[0].mxu0
  %v2117 = vpop.f32.mrb[0].mxu0
  %2118 = vdwg.mxu0
  %2119 = vmatprep.subr.bf16.mxu0 0
  %2120 = vmatpush1.bf16.msra.mxu0 %v2047
  %2121 = vmatprep.subr.bf16.mxu0 0
  %2122 = vmatpush1.bf16.msra.mxu0 %v2048
  %2123 = vmatprep.subr.bf16.mxu0 0
  %2124 = vmatpush1.bf16.msra.mxu0 %v2049
  %2125 = vmatprep.subr.bf16.mxu0 0
  %2126 = vmatpush1.bf16.msra.mxu0 %v2050
  %2127 = vmatprep.subr.bf16.mxu0 0
  %2128 = vmatpush1.bf16.msra.mxu0 %v2051
  %2129 = vmatprep.subr.bf16.mxu0 0
  %2130 = vmatpush1.bf16.msra.mxu0 %v2052
  %2131 = vmatprep.subr.bf16.mxu0 0
  %2132 = vmatpush1.bf16.msra.mxu0 %v2053
  %2133 = vmatprep.subr.bf16.mxu0 0
  %2134 = vmatpush1.bf16.msra.mxu0 %v2054
  %2135 = vmatprep.subr.bf16.mxu0 0
  %2136 = vmatpush1.bf16.msra.mxu0 0
  %2137 = vmatprep.subr.bf16.mxu0 0
  %2138 = vmatpush1.bf16.msra.mxu0 0
  %2139 = vmatprep.subr.bf16.mxu0 0
  %2140 = vmatpush1.bf16.msra.mxu0 0
  %2141 = vmatprep.subr.bf16.mxu0 0
  %2142 = vmatpush1.bf16.msra.mxu0 0
  %2143 = vmatprep.subr.bf16.mxu0 0
  %2144 = vmatpush1.bf16.msra.mxu0 0
  %2145 = vmatprep.subr.bf16.mxu0 0
  %2146 = vmatpush1.bf16.msra.mxu0 0
  %2147 = vmatprep.subr.bf16.mxu0 0
  %2148 = vmatpush1.bf16.msra.mxu0 0
  %2149 = vmatprep.subr.bf16.mxu0 0
  %2150 = vmatpush1.bf16.msra.mxu0 0
  %2151 = vmatprep.mubr.bf16.mxu0 0
  %2152 = vmatmul.mubr.bf16.gmra.mrb[0].mxu0 %v1879
  %v2153 = vpop.f32.mrb[0].mxu0
  %v2154 = vadd.f32 %v2114, %v2153
  %v2155 = vpop.f32.mrb[0].mxu0
  %v2156 = vpop.f32.mrb[0].mxu0
  %v2157 = vpop.f32.mrb[0].mxu0
  %2158 = vdwg.mxu0
  %vm2159 = vcmask 80896
  %2160 = vst.msk [vmem:[%s9] sm:$0xff] %vm2159, %v2154
  // Predicated region
  $region38: #{cnn_forward.1} parent=0 // pred_check
    _
  $region39: #{cnn_forward.1} parent=0 // pred_check_branch
    %2162 = sbr.rel (0) target = $region41
  $region40: #{cnn_forward.1} parent=0 // pred_region
    _
  $region41: #{cnn_forward.1} parent=0 // pred_fallthru
    _
  // Predicated region
  $region42: #{cnn_forward.1} parent=0 // pred_check
    _
  $region43: #{cnn_forward.1} parent=0 // pred_check_branch
    %2164 = sbr.rel (0) target = $region45
  $region44: #{cnn_forward.1} parent=0 // pred_region
    _
  $region45: #{cnn_forward.1} parent=0 // pred_fallthru
    _

</llo_original>
